<compile_context>
chip_gen: v7x
topology: tpu7x:2x2x1
jax: 0.10.0
libtpu: 0.0.40
codegen_flags: <defaults>
</compile_context>

<pallas_src>
import functools
import math

import numpy as np

import jax
import jax.numpy as jnp
from jax.experimental import pallas as pl
from jax.experimental.pallas import tpu as pltpu


# Centre tap first so the stride-2 shortcut input is lane/row block 0 (a plain
# prefix slice) in both the host-packed patches and the in-kernel gather.
TAP_ORDER = (4, 0, 1, 2, 3, 5, 6, 7, 8)


def _round_up(v, m):
    return (v + m - 1) // m * m


# ----------------------------------------------------------------------------
# Shared math (used by the Pallas kernel body and by the jnp reference)
# ----------------------------------------------------------------------------
def _fused_math(p1, w1bd, w2s1, b21, w31, ws1, b31,
                g2, w1a2, w22, b22, w32, ws2, b32, wfc, bfc, *, n):
    f32 = jnp.float32
    caug1 = ws1.shape[0]

    # ---- bottleneck 1 (stride 2): 4 GEMMs on the stride-2 output grid -------
    # conv1 (1x1) + BN + ReLU on all 9 taps at once (block-diagonal weight).
    h1 = jnp.dot(p1, w1bd, preferred_element_type=f32)            # (M1, 9*Cmid1)
    h1 = jnp.maximum(h1, 0.0).astype(jnp.bfloat16)
    # 3x3 conv + BN + ReLU as one K = 9*Cmid1 contraction.
    h2 = jnp.dot(h1, w2s1, preferred_element_type=f32) + b21      # (M1, Cmid1)
    h2 = jnp.maximum(h2, 0.0).astype(jnp.bfloat16)
    # conv3 + shortcut (centre tap) + residual add + ReLU.  w31/ws1 carry a
    # ones-passthrough column so out1 already includes block-2's ones channel.
    tap4 = p1[:, :caug1]                                          # centre tap
    out1 = (jnp.dot(h2, w31, preferred_element_type=f32)
            + jnp.dot(tap4, ws1, preferred_element_type=f32) + b31)
    out1 = jnp.maximum(out1, 0.0).astype(jnp.bfloat16)            # (M1, Caug2)

    # ---- bottleneck 2 (stride 2): in-kernel im2col via gather matmul --------
    # g2 is a constant 0/1 matrix; padded tap positions are all-zero rows, so
    # the 3x3 conv's zero padding (incl. the ones channel) is exact.
    p2 = jnp.dot(g2, out1, preferred_element_type=f32).astype(jnp.bfloat16)
    # conv1 (1x1) + BN + ReLU as ONE GEMM over all 9*M2 tap rows.
    h1b = jnp.maximum(jnp.dot(p2, w1a2, preferred_element_type=f32), 0.0)
    h1b = h1b.astype(jnp.bfloat16)                                # (9*M2, Cmid2)
    m2 = p2.shape[0] // 9
    cmid2 = w1a2.shape[1]
    h1b = h1b.reshape(9, m2, cmid2)
    # 3x3 conv: 9 small accumulated dots (tap-major layout).
    acc = jnp.dot(h1b[0], w22[0], preferred_element_type=f32)
    for t in range(1, 9):
        acc = acc + jnp.dot(h1b[t], w22[t], preferred_element_type=f32)
    h2b = jnp.maximum(acc + b22, 0.0).astype(jnp.bfloat16)        # (M2, Cmid2)
    # conv3 + shortcut (centre tap = row block 0) + residual add + ReLU.
    tap4b = p2.reshape(9, m2, p2.shape[1])[0]                     # (M2, Caug2)
    out2 = (jnp.dot(h2b, w32, preferred_element_type=f32)
            + jnp.dot(tap4b, ws2, preferred_element_type=f32) + b32)
    out2 = jnp.maximum(out2, 0.0)                                 # (M2, Cout2) f32

    # ---- head: global average pool (reshape+mean) + Linear + Tanh -----------
    pooled = jnp.mean(out2.reshape(n, m2 // n, out2.shape[1]), axis=1)   # (N, Cout2)
    logits = jnp.dot(pooled.astype(jnp.bfloat16), wfc,
                     preferred_element_type=f32) + bfc
    return jnp.tanh(logits)


# ----------------------------------------------------------------------------
# The single fused Pallas kernel (grid-less, fully VMEM resident)
# ----------------------------------------------------------------------------
def _fused_kernel(p1_ref, w1bd_ref, w2s1_ref, b21_ref, w31_ref, ws1_ref, b31_ref,
                  g2_ref, w1a2_ref, w22_ref, b22_ref, w32_ref, ws2_ref, b32_ref,
                  wfc_ref, bfc_ref, o_ref, *, n):
    out = _fused_math(
        p1_ref[...], w1bd_ref[...], w2s1_ref[...], b21_ref[...],
        w31_ref[...], ws1_ref[...], b31_ref[...],
        g2_ref[...], w1a2_ref[...], w22_ref[...], b22_ref[...],
        w32_ref[...], ws2_ref[...], b32_ref[...],
        wfc_ref[...], bfc_ref[...], n=n)
    o_ref[...] = out.astype(o_ref.dtype)


# ----------------------------------------------------------------------------
# Host-side glue: lane-dense im2col of the raw input + gather-matrix constant
# ----------------------------------------------------------------------------
def _build_patches(x_nhwc, caug):
    """(M1, 9*caug) bf16 im2col (3x3, stride 2, pad 1) of the ones-augmented
    input, tap lane-blocks ordered by TAP_ORDER (centre tap first)."""
    n, h, w, c = x_nhwc.shape
    x = x_nhwc.astype(jnp.bfloat16)
    parts = [x, jnp.ones((n, h, w, 1), jnp.bfloat16)]
    if caug > c + 1:
        parts.append(jnp.zeros((n, h, w, caug - c - 1), jnp.bfloat16))
    xa = jnp.concatenate(parts, axis=-1)
    xp = jnp.pad(xa, ((0, 0), (1, 1), (1, 1), (0, 0)))
    ho = (h + 2 - 3) // 2 + 1
    wo = (w + 2 - 3) // 2 + 1
    taps = []
    for t in TAP_ORDER:
        di, dj = t // 3, t % 3
        taps.append(xp[:, di:di + 2 * ho:2, dj:dj + 2 * wo:2, :])
    pat = jnp.concatenate(taps, axis=-1)                  # (n, ho, wo, 9*caug)
    return pat.reshape(n * ho * wo, 9 * caug), (n, ho, wo)


def _build_gather(n, hi, wi):
    """Constant 0/1 gather matrix G (9*M2, M1): row block r = tap TAP_ORDER[r]
    of the 3x3/stride-2/pad-1 im2col over an (n, hi, wi) grid; rows hitting
    padding are all-zero.  Built with numpy -> compile-time constant."""
    ho = (hi + 2 - 3) // 2 + 1
    wo = (wi + 2 - 3) // 2 + 1
    m_in, m_out = n * hi * wi, n * ho * wo
    g = np.zeros((9 * m_out, m_in), np.float32)
    for r, t in enumerate(TAP_ORDER):
        di, dj = t // 3, t % 3
        for b in range(n):
            for p in range(ho):
                for q in range(wo):
                    ii, jj = 2 * p + di - 1, 2 * q + dj - 1
                    if 0 <= ii < hi and 0 <= jj < wi:
                        g[r * m_out + b * ho * wo + p * wo + q,
                          b * hi * wi + ii * wi + jj] = 1.0
    return jnp.asarray(g, jnp.bfloat16), (ho, wo)


def branch_first_forward(x_nhwc, params, use_pallas=True):
    fp1, fp2, head = params["b1"], params["b2"], params["head"]
    n = x_nhwc.shape[0]
    caug1 = fp1["wsx"].shape[0]
    bits = head["wfc"].shape[1]

    p1, (_, ho1, wo1) = _build_patches(x_nhwc, caug1)
    g2, _ = _build_gather(n, ho1, wo1)

    args = (p1, fp1["w1bd"], fp1["w2s"], fp1["b2"], fp1["w3x"], fp1["wsx"],
            fp1["b3x"], g2, fp2["w1a"], fp2["w2"], fp2["b2"], fp2["w3"],
            fp2["wsa"], fp2["b3"], head["wfc"], head["bfc"])

    if use_pallas:
        # Grid-less: every operand is a single whole-array VMEM block.
        return pl.pallas_call(
            functools.partial(_fused_kernel, n=n),
            out_shape=jax.ShapeDtypeStruct((n, bits), jnp.float32),
            compiler_params=pltpu.CompilerParams(
                vmem_limit_bytes=32 * 1024 * 1024),
        )(*args)
    return _fused_math(*args, n=n)


# ----------------------------------------------------------------------------
# Parameter init (raw) + BN folding / packing for the fused kernel
# ----------------------------------------------------------------------------
def init_bn(key, c):
    k1, k2, k3, k4 = jax.random.split(key, 4)
    gamma = 1.0 + 0.1 * jax.random.normal(k1, (c,), jnp.float32)
    beta = 0.1 * jax.random.normal(k2, (c,), jnp.float32)
    mean = 0.1 * jax.random.normal(k3, (c,), jnp.float32)
    var = jnp.abs(jax.random.normal(k4, (c,), jnp.float32)) + 0.5
    scale = gamma / jnp.sqrt(var + 1e-5)
    bias = beta - mean * scale
    return scale, bias


def init_block_raw(key, inp, outp):
    midp = outp // 4
    ks = jax.random.split(key, 8)
    s1, b1 = init_bn(ks[1], midp)
    s2, b2 = init_bn(ks[3], midp)
    s3, b3 = init_bn(ks[5], outp)
    ss, bs = init_bn(ks[7], outp)
    return dict(
        w1=jax.random.normal(ks[0], (inp, midp), jnp.float32) / math.sqrt(inp),
        s1=s1, b1=b1,
        w2=jax.random.normal(ks[2], (3, 3, midp, midp), jnp.float32) / math.sqrt(9 * midp),
        s2=s2, b2=b2,
        w3=jax.random.normal(ks[4], (midp, outp), jnp.float32) / math.sqrt(midp),
        s3=s3, b3=b3,
        ws=jax.random.normal(ks[6], (inp, outp), jnp.float32) / math.sqrt(inp),
        ss=ss, bs=bs,
    )


def init_params(key, c_in, c_mid, c_out, bits):
    k1, k2, k3, k4 = jax.random.split(key, 4)
    return dict(
        b1=init_block_raw(k1, c_in, c_mid),
        b2=init_block_raw(k2, c_mid, c_out),
        fc_w=jax.random.normal(k3, (c_out, bits), jnp.float32) / math.sqrt(c_out),
        fc_b=0.1 * jax.random.normal(k4, (bits,), jnp.float32),
    )


def _aug_weight(w, scale, bias, caug):
    """1x1-conv weight with BN folded in, laid out for a ones-augmented input
    (BN bias rides the ones row; extra rows are zero padding)."""
    cin, cout = w.shape
    rows = [w * scale[None, :], bias[None, :]]
    if caug > cin + 1:
        rows.append(jnp.zeros((caug - cin - 1, cout), jnp.float32))
    return jnp.concatenate(rows, axis=0)          # (caug, cout)


def fold_block1(p, caug_out):
    """Block 1: block-diagonal conv1, K-stacked 3x3 taps, conv3/shortcut with a
    relu-safe ones-passthrough column appended (so the output carries the ones
    channel block 2 needs)."""
    cin, cmid = p["w1"].shape
    cout = p["w3"].shape[1]
    caug = _round_up(cin + 1, 8)
    w1a = _aug_weight(p["w1"], p["s1"], p["b1"], caug)                 # (caug, cmid)
    w1bd = jnp.kron(jnp.eye(9, dtype=jnp.float32), w1a)                # (9*caug, 9*cmid)
    w2f = (p["w2"] * p["s2"][None, None, None, :]).reshape(9, cmid, cmid)
    w2s = jnp.concatenate([w2f[t] for t in TAP_ORDER], axis=0)         # (9*cmid, cmid)
    w3x = jnp.zeros((cmid, caug_out), jnp.float32).at[:, :cout].set(
        p["w3"] * p["s3"][None, :])
    wsx = jnp.zeros((caug, caug_out), jnp.float32)
    wsx = wsx.at[:cin, :cout].set(p["ws"] * p["ss"][None, :])
    wsx = wsx.at[cin, :cout].set(p["bs"])
    wsx = wsx.at[cin, cout].set(1.0)        # ones passthrough: relu(1*1 + 0) == 1
    b3x = jnp.zeros((1, caug_out), jnp.float32).at[0, :cout].set(p["b3"])
    return dict(
        w1bd=w1bd.astype(jnp.bfloat16),
        w2s=w2s.astype(jnp.bfloat16),
        b2=p["b2"].reshape(1, cmid).astype(jnp.float32),
        w3x=w3x.astype(jnp.bfloat16),
        wsx=wsx.astype(jnp.bfloat16),
        b3x=b3x,
    )


def fold_block2(p):
    """Block 2: plain folded weights (its im2col happens in-kernel, tap-major)."""
    cin, cmid = p["w1"].shape
    cout = p["w3"].shape[1]
    caug = _round_up(cin + 1, 8)
    w1a = _aug_weight(p["w1"], p["s1"], p["b1"], caug)                 # (caug, cmid)
    w2f = (p["w2"] * p["s2"][None, None, None, :]).reshape(9, cmid, cmid)
    w2o = jnp.stack([w2f[t] for t in TAP_ORDER], axis=0)               # (9, cmid, cmid)
    wsa = _aug_weight(p["ws"], p["ss"], p["bs"], caug)                 # (caug, cout)
    return dict(
        w1a=w1a.astype(jnp.bfloat16),
        w2=w2o.astype(jnp.bfloat16),
        b2=p["b2"].reshape(1, cmid).astype(jnp.float32),
        w3=(p["w3"] * p["s3"][None, :]).astype(jnp.bfloat16),
        wsa=wsa.astype(jnp.bfloat16),
        b3=p["b3"].reshape(1, cout).astype(jnp.float32),
    )


def fold_params(raw):
    cout1 = raw["b1"]["w3"].shape[1]
    return dict(
        b1=fold_block1(raw["b1"], _round_up(cout1 + 1, 8)),
        b2=fold_block2(raw["b2"]),
        head=dict(wfc=raw["fc_w"].astype(jnp.bfloat16),
                  bfc=raw["fc_b"].reshape(1, -1).astype(jnp.float32)),
    )


# ----------------------------------------------------------------------------
# Unfused float32 reference (direct NHWC convolutions on the raw parameters)
# ----------------------------------------------------------------------------
def reference_forward_f32(x_nhwc, raw):
    def conv(x, w, stride, pad):
        return jax.lax.conv_general_dilated(
            x, w, (stride, stride), ((pad, pad), (pad, pad)),
            dimension_numbers=("NHWC", "HWIO", "NHWC"),
            precision=jax.lax.Precision.HIGHEST)

    def block(x, p):
        h = jnp.maximum(conv(x, p["w1"][None, None], 1, 0) * p["s1"] + p["b1"], 0.0)
        h = jnp.maximum(conv(h, p["w2"], 2, 1) * p["s2"] + p["b2"], 0.0)
        h = conv(h, p["w3"][None, None], 1, 0) * p["s3"] + p["b3"]
        s = conv(x, p["ws"][None, None], 2, 0) * p["ss"] + p["bs"]
        return jnp.maximum(h + s, 0.0)

    out = block(block(x_nhwc, raw["b1"]), raw["b2"])
    pooled = jnp.mean(out, axis=(1, 2))
    logits = jnp.dot(pooled, raw["fc_w"],
                     precision=jax.lax.Precision.HIGHEST) + raw["fc_b"]
    return jnp.tanh(logits)


# ----------------------------------------------------------------------------
if __name__ == "__main__":
    # Small width-scaled BranchFirst configuration:
    #   bottleneck1: 16 -> 32 (stride 2, midp 8)
    #   bottleneck2: 32 -> 64 (stride 2, midp 16)
    #   fc: 64 -> bits=8; input NCHW (2, 16, 16, 16).
    C_IN, C_MID, C_OUT, BITS = 16, 32, 64, 8
    key = jax.random.PRNGKey(0)
    kx, kp = jax.random.split(key)

    x_nchw = jax.random.normal(kx, (2, C_IN, 16, 16), jnp.float32)
    x_nhwc = jnp.transpose(x_nchw, (0, 2, 3, 1))     # layout: NCHW -> NHWC

    raw = init_params(kp, C_IN, C_MID, C_OUT, BITS)
    params = fold_params(raw)

    fwd = jax.jit(functools.partial(branch_first_forward, use_pallas=True))
    out = jax.block_until_ready(fwd(x_nhwc, params))

    # Reference 1: identical math (same folded bf16 weights / casts) in plain jnp.
    ref_same = jax.block_until_ready(
        jax.jit(functools.partial(branch_first_forward, use_pallas=False))(
            x_nhwc, params))
    # Reference 2: unfused float32 NHWC convolutions from the raw parameters
    # (validates BN folding, the ones-channel trick, tap ordering and the
    # in-kernel gather-matrix im2col).
    ref_f32 = jax.block_until_ready(jax.jit(reference_forward_f32)(x_nhwc, raw))

    assert out.shape == (2, BITS), out.shape
    assert bool(jnp.all(jnp.isfinite(out)))
    assert bool(jnp.allclose(out, ref_same, atol=1e-2, rtol=1e-2)), (out, ref_same)
    assert bool(jnp.allclose(out, ref_f32, atol=7e-2, rtol=7e-2)), (out, ref_f32)
    print("KERNEL_OK")
</pallas_src>

<mosaic_0001>
module attributes {stable_mosaic.version = 11 : i64} {
  func.func @_fused_kernel(%arg0: memref<128x216xbf16, #tpu.memory_space<vmem>>, %arg1: memref<216x72xbf16, #tpu.memory_space<vmem>>, %arg2: memref<72x8xbf16, #tpu.memory_space<vmem>>, %arg3: memref<1x8xf32, #tpu.memory_space<vmem>>, %arg4: memref<8x40xbf16, #tpu.memory_space<vmem>>, %arg5: memref<24x40xbf16, #tpu.memory_space<vmem>>, %arg6: memref<1x40xf32, #tpu.memory_space<vmem>>, %arg7: memref<288x128xbf16, #tpu.memory_space<vmem>>, %arg8: memref<40x16xbf16, #tpu.memory_space<vmem>>, %arg9: memref<9x16x16xbf16, #tpu.memory_space<vmem>>, %arg10: memref<1x16xf32, #tpu.memory_space<vmem>>, %arg11: memref<16x64xbf16, #tpu.memory_space<vmem>>, %arg12: memref<40x64xbf16, #tpu.memory_space<vmem>>, %arg13: memref<1x64xf32, #tpu.memory_space<vmem>>, %arg14: memref<64x8xbf16, #tpu.memory_space<vmem>>, %arg15: memref<1x8xf32, #tpu.memory_space<vmem>>, %arg16: memref<2x8xf32, #tpu.memory_space<vmem>>) attributes {dimension_semantics = [], scalar_prefetch = 0 : i64, scratch_operands = 0 : i64, tpu.core_type = #tpu.core_type<tc>} {
    %c0 = arith.constant 0 : index
    %c0_0 = arith.constant 0 : index
    %0 = vector.load %arg0[%c0, %c0_0] : memref<128x216xbf16, #tpu.memory_space<vmem>>, vector<128x216xbf16>
    %c0_1 = arith.constant 0 : index
    %c0_2 = arith.constant 0 : index
    %1 = vector.load %arg1[%c0_1, %c0_2] : memref<216x72xbf16, #tpu.memory_space<vmem>>, vector<216x72xbf16>
    %c0_3 = arith.constant 0 : index
    %c0_4 = arith.constant 0 : index
    %2 = vector.load %arg2[%c0_3, %c0_4] : memref<72x8xbf16, #tpu.memory_space<vmem>>, vector<72x8xbf16>
    %c0_5 = arith.constant 0 : index
    %c0_6 = arith.constant 0 : index
    %3 = vector.load %arg3[%c0_5, %c0_6] : memref<1x8xf32, #tpu.memory_space<vmem>>, vector<1x8xf32>
    %c0_7 = arith.constant 0 : index
    %c0_8 = arith.constant 0 : index
    %4 = vector.load %arg4[%c0_7, %c0_8] : memref<8x40xbf16, #tpu.memory_space<vmem>>, vector<8x40xbf16>
    %c0_9 = arith.constant 0 : index
    %c0_10 = arith.constant 0 : index
    %5 = vector.load %arg5[%c0_9, %c0_10] : memref<24x40xbf16, #tpu.memory_space<vmem>>, vector<24x40xbf16>
    %c0_11 = arith.constant 0 : index
    %c0_12 = arith.constant 0 : index
    %6 = vector.load %arg6[%c0_11, %c0_12] : memref<1x40xf32, #tpu.memory_space<vmem>>, vector<1x40xf32>
    %c0_13 = arith.constant 0 : index
    %c0_14 = arith.constant 0 : index
    %7 = vector.load %arg7[%c0_13, %c0_14] : memref<288x128xbf16, #tpu.memory_space<vmem>>, vector<288x128xbf16>
    %c0_15 = arith.constant 0 : index
    %c0_16 = arith.constant 0 : index
    %8 = vector.load %arg8[%c0_15, %c0_16] : memref<40x16xbf16, #tpu.memory_space<vmem>>, vector<40x16xbf16>
    %c0_17 = arith.constant 0 : index
    %c0_18 = arith.constant 0 : index
    %c0_19 = arith.constant 0 : index
    %9 = vector.load %arg9[%c0_17, %c0_18, %c0_19] : memref<9x16x16xbf16, #tpu.memory_space<vmem>>, vector<9x16x16xbf16>
    %c0_20 = arith.constant 0 : index
    %c0_21 = arith.constant 0 : index
    %10 = vector.load %arg10[%c0_20, %c0_21] : memref<1x16xf32, #tpu.memory_space<vmem>>, vector<1x16xf32>
    %c0_22 = arith.constant 0 : index
    %c0_23 = arith.constant 0 : index
    %11 = vector.load %arg11[%c0_22, %c0_23] : memref<16x64xbf16, #tpu.memory_space<vmem>>, vector<16x64xbf16>
    %c0_24 = arith.constant 0 : index
    %c0_25 = arith.constant 0 : index
    %12 = vector.load %arg12[%c0_24, %c0_25] : memref<40x64xbf16, #tpu.memory_space<vmem>>, vector<40x64xbf16>
    %c0_26 = arith.constant 0 : index
    %c0_27 = arith.constant 0 : index
    %13 = vector.load %arg13[%c0_26, %c0_27] : memref<1x64xf32, #tpu.memory_space<vmem>>, vector<1x64xf32>
    %c0_28 = arith.constant 0 : index
    %c0_29 = arith.constant 0 : index
    %14 = vector.load %arg14[%c0_28, %c0_29] : memref<64x8xbf16, #tpu.memory_space<vmem>>, vector<64x8xbf16>
    %c0_30 = arith.constant 0 : index
    %c0_31 = arith.constant 0 : index
    %15 = vector.load %arg15[%c0_30, %c0_31] : memref<1x8xf32, #tpu.memory_space<vmem>>, vector<1x8xf32>
    %cst = arith.constant dense<0.000000e+00> : vector<128x72xf32>
    %16 = tpu.matmul %0, %1, %cst {dimension_numbers = #tpu.dot_dimension_numbers<[1], [0], [0], [1], [0, 0, 1, 1], [], []>} : vector<128x216xbf16>, vector<216x72xbf16>, vector<128x72xf32> -> vector<128x72xf32>
    %cst_32 = arith.constant 0.000000e+00 : f32
    %17 = vector.broadcast %cst_32 : f32 to vector<128x72xf32>
    %18 = arith.maximumf %16, %17 : vector<128x72xf32>
    %19 = arith.truncf %18 : vector<128x72xf32> to vector<128x72xbf16>
    %cst_33 = arith.constant dense<0.000000e+00> : vector<128x8xf32>
    %20 = tpu.matmul %19, %2, %cst_33 {dimension_numbers = #tpu.dot_dimension_numbers<[1], [0], [0], [1], [0, 0, 1, 1], [], []>} : vector<128x72xbf16>, vector<72x8xbf16>, vector<128x8xf32> -> vector<128x8xf32>
    %21 = vector.broadcast %3 : vector<1x8xf32> to vector<128x8xf32>
    %22 = arith.addf %20, %21 : vector<128x8xf32>
    %cst_34 = arith.constant 0.000000e+00 : f32
    %23 = vector.broadcast %cst_34 : f32 to vector<128x8xf32>
    %24 = arith.maximumf %22, %23 : vector<128x8xf32>
    %25 = arith.truncf %24 : vector<128x8xf32> to vector<128x8xbf16>
    %26 = vector.extract_strided_slice %0 {offsets = [0, 0], sizes = [128, 24], strides = [1, 1]} : vector<128x216xbf16> to vector<128x24xbf16>
    %cst_35 = arith.constant dense<0.000000e+00> : vector<128x40xf32>
    %27 = tpu.matmul %25, %4, %cst_35 {dimension_numbers = #tpu.dot_dimension_numbers<[1], [0], [0], [1], [0, 0, 1, 1], [], []>} : vector<128x8xbf16>, vector<8x40xbf16>, vector<128x40xf32> -> vector<128x40xf32>
    %cst_36 = arith.constant dense<0.000000e+00> : vector<128x40xf32>
    %28 = tpu.matmul %26, %5, %cst_36 {dimension_numbers = #tpu.dot_dimension_numbers<[1], [0], [0], [1], [0, 0, 1, 1], [], []>} : vector<128x24xbf16>, vector<24x40xbf16>, vector<128x40xf32> -> vector<128x40xf32>
    %29 = arith.addf %27, %28 : vector<128x40xf32>
    %30 = vector.broadcast %6 : vector<1x40xf32> to vector<128x40xf32>
    %31 = arith.addf %29, %30 : vector<128x40xf32>
    %cst_37 = arith.constant 0.000000e+00 : f32
    %32 = vector.broadcast %cst_37 : f32 to vector<128x40xf32>
    %33 = arith.maximumf %31, %32 : vector<128x40xf32>
    %34 = arith.truncf %33 : vector<128x40xf32> to vector<128x40xbf16>
    %cst_38 = arith.constant dense<0.000000e+00> : vector<288x40xf32>
    %35 = tpu.matmul %7, %34, %cst_38 {dimension_numbers = #tpu.dot_dimension_numbers<[1], [0], [0], [1], [0, 0, 1, 1], [], []>} : vector<288x128xbf16>, vector<128x40xbf16>, vector<288x40xf32> -> vector<288x40xf32>
    %36 = arith.truncf %35 : vector<288x40xf32> to vector<288x40xbf16>
    %cst_39 = arith.constant dense<0.000000e+00> : vector<288x16xf32>
    %37 = tpu.matmul %36, %8, %cst_39 {dimension_numbers = #tpu.dot_dimension_numbers<[1], [0], [0], [1], [0, 0, 1, 1], [], []>} : vector<288x40xbf16>, vector<40x16xbf16>, vector<288x16xf32> -> vector<288x16xf32>
    %cst_40 = arith.constant 0.000000e+00 : f32
    %38 = vector.broadcast %cst_40 : f32 to vector<288x16xf32>
    %39 = arith.maximumf %37, %38 : vector<288x16xf32>
    %40 = arith.truncf %39 : vector<288x16xf32> to vector<288x16xbf16>
    %41 = vector.shape_cast %40 : vector<288x16xbf16> to vector<9x32x16xbf16>
    %42 = vector.extract_strided_slice %41 {offsets = [0, 0, 0], sizes = [1, 32, 16], strides = [1, 1, 1]} : vector<9x32x16xbf16> to vector<1x32x16xbf16>
    %43 = vector.shape_cast %42 : vector<1x32x16xbf16> to vector<32x16xbf16>
    %44 = vector.extract_strided_slice %9 {offsets = [0, 0, 0], sizes = [1, 16, 16], strides = [1, 1, 1]} : vector<9x16x16xbf16> to vector<1x16x16xbf16>
    %45 = vector.shape_cast %44 : vector<1x16x16xbf16> to vector<16x16xbf16>
    %cst_41 = arith.constant dense<0.000000e+00> : vector<32x16xf32>
    %46 = tpu.matmul %43, %45, %cst_41 {dimension_numbers = #tpu.dot_dimension_numbers<[1], [0], [0], [1], [0, 0, 1, 1], [], []>} : vector<32x16xbf16>, vector<16x16xbf16>, vector<32x16xf32> -> vector<32x16xf32>
    %47 = vector.extract_strided_slice %41 {offsets = [1, 0, 0], sizes = [1, 32, 16], strides = [1, 1, 1]} : vector<9x32x16xbf16> to vector<1x32x16xbf16>
    %48 = vector.shape_cast %47 : vector<1x32x16xbf16> to vector<32x16xbf16>
    %49 = vector.extract_strided_slice %9 {offsets = [1, 0, 0], sizes = [1, 16, 16], strides = [1, 1, 1]} : vector<9x16x16xbf16> to vector<1x16x16xbf16>
    %50 = vector.shape_cast %49 : vector<1x16x16xbf16> to vector<16x16xbf16>
    %cst_42 = arith.constant dense<0.000000e+00> : vector<32x16xf32>
    %51 = tpu.matmul %48, %50, %cst_42 {dimension_numbers = #tpu.dot_dimension_numbers<[1], [0], [0], [1], [0, 0, 1, 1], [], []>} : vector<32x16xbf16>, vector<16x16xbf16>, vector<32x16xf32> -> vector<32x16xf32>
    %52 = arith.addf %46, %51 : vector<32x16xf32>
    %53 = vector.extract_strided_slice %41 {offsets = [2, 0, 0], sizes = [1, 32, 16], strides = [1, 1, 1]} : vector<9x32x16xbf16> to vector<1x32x16xbf16>
    %54 = vector.shape_cast %53 : vector<1x32x16xbf16> to vector<32x16xbf16>
    %55 = vector.extract_strided_slice %9 {offsets = [2, 0, 0], sizes = [1, 16, 16], strides = [1, 1, 1]} : vector<9x16x16xbf16> to vector<1x16x16xbf16>
    %56 = vector.shape_cast %55 : vector<1x16x16xbf16> to vector<16x16xbf16>
    %cst_43 = arith.constant dense<0.000000e+00> : vector<32x16xf32>
    %57 = tpu.matmul %54, %56, %cst_43 {dimension_numbers = #tpu.dot_dimension_numbers<[1], [0], [0], [1], [0, 0, 1, 1], [], []>} : vector<32x16xbf16>, vector<16x16xbf16>, vector<32x16xf32> -> vector<32x16xf32>
    %58 = arith.addf %52, %57 : vector<32x16xf32>
    %59 = vector.extract_strided_slice %41 {offsets = [3, 0, 0], sizes = [1, 32, 16], strides = [1, 1, 1]} : vector<9x32x16xbf16> to vector<1x32x16xbf16>
    %60 = vector.shape_cast %59 : vector<1x32x16xbf16> to vector<32x16xbf16>
    %61 = vector.extract_strided_slice %9 {offsets = [3, 0, 0], sizes = [1, 16, 16], strides = [1, 1, 1]} : vector<9x16x16xbf16> to vector<1x16x16xbf16>
    %62 = vector.shape_cast %61 : vector<1x16x16xbf16> to vector<16x16xbf16>
    %cst_44 = arith.constant dense<0.000000e+00> : vector<32x16xf32>
    %63 = tpu.matmul %60, %62, %cst_44 {dimension_numbers = #tpu.dot_dimension_numbers<[1], [0], [0], [1], [0, 0, 1, 1], [], []>} : vector<32x16xbf16>, vector<16x16xbf16>, vector<32x16xf32> -> vector<32x16xf32>
    %64 = arith.addf %58, %63 : vector<32x16xf32>
    %65 = vector.extract_strided_slice %41 {offsets = [4, 0, 0], sizes = [1, 32, 16], strides = [1, 1, 1]} : vector<9x32x16xbf16> to vector<1x32x16xbf16>
    %66 = vector.shape_cast %65 : vector<1x32x16xbf16> to vector<32x16xbf16>
    %67 = vector.extract_strided_slice %9 {offsets = [4, 0, 0], sizes = [1, 16, 16], strides = [1, 1, 1]} : vector<9x16x16xbf16> to vector<1x16x16xbf16>
    %68 = vector.shape_cast %67 : vector<1x16x16xbf16> to vector<16x16xbf16>
    %cst_45 = arith.constant dense<0.000000e+00> : vector<32x16xf32>
    %69 = tpu.matmul %66, %68, %cst_45 {dimension_numbers = #tpu.dot_dimension_numbers<[1], [0], [0], [1], [0, 0, 1, 1], [], []>} : vector<32x16xbf16>, vector<16x16xbf16>, vector<32x16xf32> -> vector<32x16xf32>
    %70 = arith.addf %64, %69 : vector<32x16xf32>
    %71 = vector.extract_strided_slice %41 {offsets = [5, 0, 0], sizes = [1, 32, 16], strides = [1, 1, 1]} : vector<9x32x16xbf16> to vector<1x32x16xbf16>
    %72 = vector.shape_cast %71 : vector<1x32x16xbf16> to vector<32x16xbf16>
    %73 = vector.extract_strided_slice %9 {offsets = [5, 0, 0], sizes = [1, 16, 16], strides = [1, 1, 1]} : vector<9x16x16xbf16> to vector<1x16x16xbf16>
    %74 = vector.shape_cast %73 : vector<1x16x16xbf16> to vector<16x16xbf16>
    %cst_46 = arith.constant dense<0.000000e+00> : vector<32x16xf32>
    %75 = tpu.matmul %72, %74, %cst_46 {dimension_numbers = #tpu.dot_dimension_numbers<[1], [0], [0], [1], [0, 0, 1, 1], [], []>} : vector<32x16xbf16>, vector<16x16xbf16>, vector<32x16xf32> -> vector<32x16xf32>
    %76 = arith.addf %70, %75 : vector<32x16xf32>
    %77 = vector.extract_strided_slice %41 {offsets = [6, 0, 0], sizes = [1, 32, 16], strides = [1, 1, 1]} : vector<9x32x16xbf16> to vector<1x32x16xbf16>
    %78 = vector.shape_cast %77 : vector<1x32x16xbf16> to vector<32x16xbf16>
    %79 = vector.extract_strided_slice %9 {offsets = [6, 0, 0], sizes = [1, 16, 16], strides = [1, 1, 1]} : vector<9x16x16xbf16> to vector<1x16x16xbf16>
    %80 = vector.shape_cast %79 : vector<1x16x16xbf16> to vector<16x16xbf16>
    %cst_47 = arith.constant dense<0.000000e+00> : vector<32x16xf32>
    %81 = tpu.matmul %78, %80, %cst_47 {dimension_numbers = #tpu.dot_dimension_numbers<[1], [0], [0], [1], [0, 0, 1, 1], [], []>} : vector<32x16xbf16>, vector<16x16xbf16>, vector<32x16xf32> -> vector<32x16xf32>
    %82 = arith.addf %76, %81 : vector<32x16xf32>
    %83 = vector.extract_strided_slice %41 {offsets = [7, 0, 0], sizes = [1, 32, 16], strides = [1, 1, 1]} : vector<9x32x16xbf16> to vector<1x32x16xbf16>
    %84 = vector.shape_cast %83 : vector<1x32x16xbf16> to vector<32x16xbf16>
    %85 = vector.extract_strided_slice %9 {offsets = [7, 0, 0], sizes = [1, 16, 16], strides = [1, 1, 1]} : vector<9x16x16xbf16> to vector<1x16x16xbf16>
    %86 = vector.shape_cast %85 : vector<1x16x16xbf16> to vector<16x16xbf16>
    %cst_48 = arith.constant dense<0.000000e+00> : vector<32x16xf32>
    %87 = tpu.matmul %84, %86, %cst_48 {dimension_numbers = #tpu.dot_dimension_numbers<[1], [0], [0], [1], [0, 0, 1, 1], [], []>} : vector<32x16xbf16>, vector<16x16xbf16>, vector<32x16xf32> -> vector<32x16xf32>
    %88 = arith.addf %82, %87 : vector<32x16xf32>
    %89 = vector.extract_strided_slice %41 {offsets = [8, 0, 0], sizes = [1, 32, 16], strides = [1, 1, 1]} : vector<9x32x16xbf16> to vector<1x32x16xbf16>
    %90 = vector.shape_cast %89 : vector<1x32x16xbf16> to vector<32x16xbf16>
    %91 = vector.extract_strided_slice %9 {offsets = [8, 0, 0], sizes = [1, 16, 16], strides = [1, 1, 1]} : vector<9x16x16xbf16> to vector<1x16x16xbf16>
    %92 = vector.shape_cast %91 : vector<1x16x16xbf16> to vector<16x16xbf16>
    %cst_49 = arith.constant dense<0.000000e+00> : vector<32x16xf32>
    %93 = tpu.matmul %90, %92, %cst_49 {dimension_numbers = #tpu.dot_dimension_numbers<[1], [0], [0], [1], [0, 0, 1, 1], [], []>} : vector<32x16xbf16>, vector<16x16xbf16>, vector<32x16xf32> -> vector<32x16xf32>
    %94 = arith.addf %88, %93 : vector<32x16xf32>
    %95 = vector.broadcast %10 : vector<1x16xf32> to vector<32x16xf32>
    %96 = arith.addf %94, %95 : vector<32x16xf32>
    %cst_50 = arith.constant 0.000000e+00 : f32
    %97 = vector.broadcast %cst_50 : f32 to vector<32x16xf32>
    %98 = arith.maximumf %96, %97 : vector<32x16xf32>
    %99 = arith.truncf %98 : vector<32x16xf32> to vector<32x16xbf16>
    %100 = vector.shape_cast %36 : vector<288x40xbf16> to vector<9x32x40xbf16>
    %101 = vector.extract_strided_slice %100 {offsets = [0, 0, 0], sizes = [1, 32, 40], strides = [1, 1, 1]} : vector<9x32x40xbf16> to vector<1x32x40xbf16>
    %102 = vector.shape_cast %101 : vector<1x32x40xbf16> to vector<32x40xbf16>
    %cst_51 = arith.constant dense<0.000000e+00> : vector<32x64xf32>
    %103 = tpu.matmul %99, %11, %cst_51 {dimension_numbers = #tpu.dot_dimension_numbers<[1], [0], [0], [1], [0, 0, 1, 1], [], []>} : vector<32x16xbf16>, vector<16x64xbf16>, vector<32x64xf32> -> vector<32x64xf32>
    %cst_52 = arith.constant dense<0.000000e+00> : vector<32x64xf32>
    %104 = tpu.matmul %102, %12, %cst_52 {dimension_numbers = #tpu.dot_dimension_numbers<[1], [0], [0], [1], [0, 0, 1, 1], [], []>} : vector<32x40xbf16>, vector<40x64xbf16>, vector<32x64xf32> -> vector<32x64xf32>
    %105 = arith.addf %103, %104 : vector<32x64xf32>
    %106 = vector.broadcast %13 : vector<1x64xf32> to vector<32x64xf32>
    %107 = arith.addf %105, %106 : vector<32x64xf32>
    %cst_53 = arith.constant 0.000000e+00 : f32
    %108 = vector.broadcast %cst_53 : f32 to vector<32x64xf32>
    %109 = arith.maximumf %107, %108 : vector<32x64xf32>
    %110 = vector.shape_cast %109 : vector<32x64xf32> to vector<2x16x64xf32>
    %cst_54 = arith.constant dense<0.000000e+00> : vector<2x64xf32>
    %111 = vector.multi_reduction <add>, %110, %cst_54 [1] : vector<2x16x64xf32> to vector<2x64xf32>
    %cst_55 = arith.constant 1.600000e+01 : f32
    %112 = vector.broadcast %cst_55 : f32 to vector<2x64xf32>
    %113 = arith.divf %111, %112 : vector<2x64xf32>
    %114 = arith.truncf %113 : vector<2x64xf32> to vector<2x64xbf16>
    %cst_56 = arith.constant dense<0.000000e+00> : vector<2x8xf32>
    %115 = tpu.matmul %114, %14, %cst_56 {dimension_numbers = #tpu.dot_dimension_numbers<[1], [0], [0], [1], [0, 0, 1, 1], [], []>} : vector<2x64xbf16>, vector<64x8xbf16>, vector<2x8xf32> -> vector<2x8xf32>
    %116 = vector.broadcast %15 : vector<1x8xf32> to vector<2x8xf32>
    %117 = arith.addf %115, %116 : vector<2x8xf32>
    %118 = math.tanh %117 : vector<2x8xf32>
    %c0_57 = arith.constant 0 : index
    %c0_58 = arith.constant 0 : index
    %119 = vector.load %arg16[%c0_57, %c0_58] : memref<2x8xf32, #tpu.memory_space<vmem>>, vector<2x8xf32>
    tpu.vector_store %arg16[%c0_57, %c0_58], %118 {strides = array<i32>} : memref<2x8xf32, #tpu.memory_space<vmem>>, vector<2x8xf32>,
    return
  }
}

</mosaic_0001>

<llo_original>
// kernel: branch_first_forward.1
$region0: #{branch_first_forward.1}
  #allocation0 [shape = 'u32[]', space=smem, size = 0x4, offset = 0x4, fixed_abs, tag = 'smem constant byte address 0x4 - core index']
  #allocation1 [shape = 'u32[144,128]{1,0:T(1,128)}', space=vmem, size = 0x12000, scoped, tag = 'internal scratch']
  %s0 = inlined_call_operand.vmem [shape: bf16[128,216], index: 0, kind: input, shape index: {}]
  %s1 = inlined_call_operand.vmem [shape: bf16[216,72], index: 1, kind: input, shape index: {}]
  %s2 = inlined_call_operand.vmem [shape: bf16[72,8], index: 2, kind: input, shape index: {}]
  %s3 = inlined_call_operand.vmem [shape: f32[1,8], index: 3, kind: input, shape index: {}]
  %s4 = inlined_call_operand.vmem [shape: bf16[8,40], index: 4, kind: input, shape index: {}]
  %s5 = inlined_call_operand.vmem [shape: bf16[24,40], index: 5, kind: input, shape index: {}]
  %s6 = inlined_call_operand.vmem [shape: f32[1,40], index: 6, kind: input, shape index: {}]
  %s7 = inlined_call_operand.vmem [shape: bf16[288,128], index: 7, kind: input, shape index: {}]
  %s8 = inlined_call_operand.vmem [shape: bf16[40,16], index: 8, kind: input, shape index: {}]
  %s9 = inlined_call_operand.vmem [shape: bf16[9,16,16], index: 9, kind: input, shape index: {}]
  %s10 = inlined_call_operand.vmem [shape: f32[1,16], index: 10, kind: input, shape index: {}]
  %s11 = inlined_call_operand.vmem [shape: bf16[16,64], index: 11, kind: input, shape index: {}]
  %s12 = inlined_call_operand.vmem [shape: bf16[40,64], index: 12, kind: input, shape index: {}]
  %s13 = inlined_call_operand.vmem [shape: f32[1,64], index: 13, kind: input, shape index: {}]
  %s14 = inlined_call_operand.vmem [shape: bf16[64,8], index: 14, kind: input, shape index: {}]
  %s15 = inlined_call_operand.vmem [shape: f32[1,8], index: 15, kind: input, shape index: {}]
  %s16 = inlined_call_operand.hbm [shape: f32[2,8], index: 16, kind: output, shape index: {}]
  %s17 = sld [smem:[#allocation0]]
  $region74: #{branch_first_forward.1} parent=0
    _
  %s19 = ssub.s32 1, %s17
  %s20 = scalar_select 0, %s19, %s17
  $region1: #{branch_first_forward.1} parent=0
    #allocation2 [shape = 'u8[1024]{0}', space=vmem, size = 0x400, scoped, tag = 'output window, operand 0, single buffered']
    #allocation3 [shape = 's32[1]{0}', space=sflag, size = 0x4, scoped, tag = 'scoped memory for branch_first_forward.1']
    %21 = vsyncpa [#allocation3], 0
    // Predicated region
    $region2: #{branch_first_forward.1} parent=1 // pred_check
      _
    $region3: #{branch_first_forward.1} parent=1 // pred_check_branch
      %23 = sbr.rel (0) target = $region5
    $region4: #{branch_first_forward.1} parent=1 // pred_region
      _
    $region5: #{branch_first_forward.1} parent=1 // pred_fallthru
      _
    // Predicated region
    $region6: #{branch_first_forward.1} parent=1 // pred_check
      _
    $region7: #{branch_first_forward.1} parent=1 // pred_check_branch
      %25 = sbr.rel (0) target = $region9
    $region8: #{branch_first_forward.1} parent=1 // pred_region
      _
    $region9: #{branch_first_forward.1} parent=1 // pred_fallthru
      _
    // Predicated region
    $region10: #{branch_first_forward.1} parent=1 // pred_check
      _
    $region11: #{branch_first_forward.1} parent=1 // pred_check_branch
      %27 = sbr.rel (0) target = $region13
    $region12: #{branch_first_forward.1} parent=1 // pred_region
      _
    $region13: #{branch_first_forward.1} parent=1 // pred_fallthru
      _
    // Predicated region
    $region14: #{branch_first_forward.1} parent=1 // pred_check
      _
    $region15: #{branch_first_forward.1} parent=1 // pred_check_branch
      %29 = sbr.rel (0) target = $region17
    $region16: #{branch_first_forward.1} parent=1 // pred_region
      _
    $region17: #{branch_first_forward.1} parent=1 // pred_fallthru
      _
    // Predicated region
    $region18: #{branch_first_forward.1} parent=1 // pred_check
      _
    $region19: #{branch_first_forward.1} parent=1 // pred_check_branch
      %31 = sbr.rel (0) target = $region21
    $region20: #{branch_first_forward.1} parent=1 // pred_region
      _
    $region21: #{branch_first_forward.1} parent=1 // pred_fallthru
      _
    // Predicated region
    $region22: #{branch_first_forward.1} parent=1 // pred_check
      _
    $region23: #{branch_first_forward.1} parent=1 // pred_check_branch
      %33 = sbr.rel (0) target = $region25
    $region24: #{branch_first_forward.1} parent=1 // pred_region
      _
    $region25: #{branch_first_forward.1} parent=1 // pred_fallthru
      _
    // Predicated region
    $region26: #{branch_first_forward.1} parent=1 // pred_check
      _
    $region27: #{branch_first_forward.1} parent=1 // pred_check_branch
      %35 = sbr.rel (0) target = $region29
    $region28: #{branch_first_forward.1} parent=1 // pred_region
      _
    $region29: #{branch_first_forward.1} parent=1 // pred_fallthru
      _
    // Predicated region
    $region30: #{branch_first_forward.1} parent=1 // pred_check
      _
    $region31: #{branch_first_forward.1} parent=1 // pred_check_branch
      %37 = sbr.rel (0) target = $region33
    $region32: #{branch_first_forward.1} parent=1 // pred_region
      _
    $region33: #{branch_first_forward.1} parent=1 // pred_fallthru
      _
    // Predicated region
    $region34: #{branch_first_forward.1} parent=1 // pred_check
      _
    $region35: #{branch_first_forward.1} parent=1 // pred_check_branch
      %39 = sbr.rel (0) target = $region37
    $region36: #{branch_first_forward.1} parent=1 // pred_region
      _
    $region37: #{branch_first_forward.1} parent=1 // pred_fallthru
      _
    // Predicated region
    $region38: #{branch_first_forward.1} parent=1 // pred_check
      _
    $region39: #{branch_first_forward.1} parent=1 // pred_check_branch
      %41 = sbr.rel (0) target = $region41
    $region40: #{branch_first_forward.1} parent=1 // pred_region
      _
    $region41: #{branch_first_forward.1} parent=1 // pred_fallthru
      _
    // Predicated region
    $region42: #{branch_first_forward.1} parent=1 // pred_check
      _
    $region43: #{branch_first_forward.1} parent=1 // pred_check_branch
      %43 = sbr.rel (0) target = $region45
    $region44: #{branch_first_forward.1} parent=1 // pred_region
      _
    $region45: #{branch_first_forward.1} parent=1 // pred_fallthru
      _
    // Predicated region
    $region46: #{branch_first_forward.1} parent=1 // pred_check
      _
    $region47: #{branch_first_forward.1} parent=1 // pred_check_branch
      %45 = sbr.rel (0) target = $region49
    $region48: #{branch_first_forward.1} parent=1 // pred_region
      _
    $region49: #{branch_first_forward.1} parent=1 // pred_fallthru
      _
    // Predicated region
    $region50: #{branch_first_forward.1} parent=1 // pred_check
      _
    $region51: #{branch_first_forward.1} parent=1 // pred_check_branch
      %47 = sbr.rel (0) target = $region53
    $region52: #{branch_first_forward.1} parent=1 // pred_region
      _
    $region53: #{branch_first_forward.1} parent=1 // pred_fallthru
      _
    // Predicated region
    $region54: #{branch_first_forward.1} parent=1 // pred_check
      _
    $region55: #{branch_first_forward.1} parent=1 // pred_check_branch
      %49 = sbr.rel (0) target = $region57
    $region56: #{branch_first_forward.1} parent=1 // pred_region
      _
    $region57: #{branch_first_forward.1} parent=1 // pred_fallthru
      _
    // Predicated region
    $region58: #{branch_first_forward.1} parent=1 // pred_check
      _
    $region59: #{branch_first_forward.1} parent=1 // pred_check_branch
      %51 = sbr.rel (0) target = $region61
    $region60: #{branch_first_forward.1} parent=1 // pred_region
      _
    $region61: #{branch_first_forward.1} parent=1 // pred_fallthru
      _
    // Predicated region
    $region62: #{branch_first_forward.1} parent=1 // pred_check
      _
    $region63: #{branch_first_forward.1} parent=1 // pred_check_branch
      %53 = sbr.rel (0) target = $region65
    $region64: #{branch_first_forward.1} parent=1 // pred_region
      _
    $region65: #{branch_first_forward.1} parent=1 // pred_fallthru
      _
    %v55 = vld [vmem:[%s0] sm:$0xff]
    %v56 = vld [vmem:[%s0 + $0x8] sm:$0xff]
    %v57 = vld [vmem:[%s0 + $0x10] sm:$0xff]
    %v58 = vld [vmem:[%s0 + $0x18] sm:$0xff]
    %v59 = vld [vmem:[%s0 + $0x20] sm:$0xff]
    %v60 = vld [vmem:[%s0 + $0x28] sm:$0xff]
    %v61 = vld [vmem:[%s0 + $0x30] sm:$0xff]
    %v62 = vld [vmem:[%s0 + $0x38] sm:$0xff]
    %v63 = vld [vmem:[%s0 + $0x40] sm:$0xff]
    %v64 = vld [vmem:[%s0 + $0x48] sm:$0xff]
    %v65 = vld [vmem:[%s0 + $0x50] sm:$0xff]
    %v66 = vld [vmem:[%s0 + $0x58] sm:$0xff]
    %v67 = vld [vmem:[%s0 + $0x60] sm:$0xff]
    %v68 = vld [vmem:[%s0 + $0x68] sm:$0xff]
    %v69 = vld [vmem:[%s0 + $0x70] sm:$0xff]
    %v70 = vld [vmem:[%s0 + $0x78] sm:$0xff]
    %v71 = vld [vmem:[%s1] sm:$0xf]
    %v72 = vld [vmem:[%s1 + $0x4] sm:$0xf]
    %v73 = vld [vmem:[%s1 + $0x8] sm:$0xf]
    %v74 = vld [vmem:[%s1 + $0xc] sm:$0xf]
    %v75 = vld [vmem:[%s1 + $0x10] sm:$0xf]
    %v76 = vld [vmem:[%s1 + $0x14] sm:$0xf]
    %v77 = vld [vmem:[%s1 + $0x18] sm:$0xf]
    %v78 = vld [vmem:[%s1 + $0x1c] sm:$0xf]
    %v79 = vld [vmem:[%s1 + $0x20] sm:$0xf]
    %v80 = vld [vmem:[%s1 + $0x24] sm:$0xf]
    %v81 = vld [vmem:[%s1 + $0x28] sm:$0xf]
    %v82 = vld [vmem:[%s1 + $0x2c] sm:$0xf]
    %v83 = vld [vmem:[%s1 + $0x30] sm:$0xf]
    %v84 = vld [vmem:[%s1 + $0x34] sm:$0xf]
    %v85 = vld [vmem:[%s1 + $0x38] sm:$0xf]
    %v86 = vld [vmem:[%s1 + $0x3c] sm:$0xf]
    %v87 = vld [vmem:[%s1 + $0x40] sm:$0xf]
    %v88 = vld [vmem:[%s1 + $0x44] sm:$0xf]
    %v89 = vld [vmem:[%s1 + $0x48] sm:$0xf]
    %v90 = vld [vmem:[%s1 + $0x4c] sm:$0xf]
    %v91 = vld [vmem:[%s1 + $0x50] sm:$0xf]
    %v92 = vld [vmem:[%s1 + $0x54] sm:$0xf]
    %v93 = vld [vmem:[%s1 + $0x58] sm:$0xf]
    %v94 = vld [vmem:[%s1 + $0x5c] sm:$0xf]
    %v95 = vld [vmem:[%s1 + $0x60] sm:$0xf]
    %v96 = vld [vmem:[%s1 + $0x64] sm:$0xf]
    %v97 = vld [vmem:[%s1 + $0x68] sm:$0xf]
    %v98 = vld [vmem:[%s2] sm:$0xf]
    %v99 = vld [vmem:[%s2 + $0x4] sm:$0xf]
    %v100 = vld [vmem:[%s2 + $0x8] sm:$0xf]
    %v101 = vld [vmem:[%s2 + $0xc] sm:$0xf]
    %v102 = vld [vmem:[%s2 + $0x10] sm:$0xf]
    %v103 = vld [vmem:[%s2 + $0x14] sm:$0xf]
    %v104 = vld [vmem:[%s2 + $0x18] sm:$0xf]
    %v105 = vld [vmem:[%s2 + $0x1c] sm:$0xf]
    %v106 = vld [vmem:[%s2 + $0x20] sm:$0xf]
    %v107 = vld [vmem:[%s3] sm:$0x1]
    %v108 = vld [vmem:[%s4] sm:$0xf]
    %v109 = vld [vmem:[%s5] sm:$0xf]
    %v110 = vld [vmem:[%s5 + $0x4] sm:$0xf]
    %v111 = vld [vmem:[%s5 + $0x8] sm:$0xf]
    %v112 = vld [vmem:[%s6] sm:$0x1]
    %v113 = vld [vmem:[%s7] sm:$0xf]
    %v114 = vld [vmem:[%s7 + $0x4] sm:$0xf]
    %v115 = vld [vmem:[%s7 + $0x8] sm:$0xf]
    %v116 = vld [vmem:[%s7 + $0xc] sm:$0xf]
    %v117 = vld [vmem:[%s7 + $0x10] sm:$0xf]
    %v118 = vld [vmem:[%s7 + $0x14] sm:$0xf]
    %v119 = vld [vmem:[%s7 + $0x18] sm:$0xf]
    %v120 = vld [vmem:[%s7 + $0x1c] sm:$0xf]
    %v121 = vld [vmem:[%s7 + $0x20] sm:$0xf]
    %v122 = vld [vmem:[%s7 + $0x24] sm:$0xf]
    %v123 = vld [vmem:[%s7 + $0x28] sm:$0xf]
    %v124 = vld [vmem:[%s7 + $0x2c] sm:$0xf]
    %v125 = vld [vmem:[%s7 + $0x30] sm:$0xf]
    %v126 = vld [vmem:[%s7 + $0x34] sm:$0xf]
    %v127 = vld [vmem:[%s7 + $0x38] sm:$0xf]
    %v128 = vld [vmem:[%s7 + $0x3c] sm:$0xf]
    %v129 = vld [vmem:[%s7 + $0x40] sm:$0xf]
    %v130 = vld [vmem:[%s7 + $0x44] sm:$0xf]
    %v131 = vld [vmem:[%s7 + $0x48] sm:$0xf]
    %v132 = vld [vmem:[%s7 + $0x4c] sm:$0xf]
    %v133 = vld [vmem:[%s7 + $0x50] sm:$0xf]
    %v134 = vld [vmem:[%s7 + $0x54] sm:$0xf]
    %v135 = vld [vmem:[%s7 + $0x58] sm:$0xf]
    %v136 = vld [vmem:[%s7 + $0x5c] sm:$0xf]
    %v137 = vld [vmem:[%s7 + $0x60] sm:$0xf]
    %v138 = vld [vmem:[%s7 + $0x64] sm:$0xf]
    %v139 = vld [vmem:[%s7 + $0x68] sm:$0xf]
    %v140 = vld [vmem:[%s7 + $0x6c] sm:$0xf]
    %v141 = vld [vmem:[%s7 + $0x70] sm:$0xf]
    %v142 = vld [vmem:[%s7 + $0x74] sm:$0xf]
    %v143 = vld [vmem:[%s7 + $0x78] sm:$0xf]
    %v144 = vld [vmem:[%s7 + $0x7c] sm:$0xf]
    %v145 = vld [vmem:[%s7 + $0x80] sm:$0xf]
    %v146 = vld [vmem:[%s7 + $0x84] sm:$0xf]
    %v147 = vld [vmem:[%s7 + $0x88] sm:$0xf]
    %v148 = vld [vmem:[%s7 + $0x8c] sm:$0xf]
    %v149 = vld [vmem:[%s8] sm:$0xf]
    %v150 = vld [vmem:[%s8 + $0x4] sm:$0xf]
    %v151 = vld [vmem:[%s8 + $0x8] sm:$0xf]
    %v152 = vld [vmem:[%s8 + $0xc] sm:$0xf]
    %v153 = vld [vmem:[%s8 + $0x10] sm:$0xf]
    %v154 = vld [vmem:[%s9] sm:$0xf]
    %v155 = vld [vmem:[%s9 + $0x4] sm:$0xf]
    %v156 = vld [vmem:[%s9 + $0x8] sm:$0xf]
    %v157 = vld [vmem:[%s9 + $0xc] sm:$0xf]
    %v158 = vld [vmem:[%s9 + $0x10] sm:$0xf]
    %v159 = vld [vmem:[%s9 + $0x14] sm:$0xf]
    %v160 = vld [vmem:[%s9 + $0x18] sm:$0xf]
    %v161 = vld [vmem:[%s9 + $0x1c] sm:$0xf]
    %v162 = vld [vmem:[%s9 + $0x20] sm:$0xf]
    %v163 = vld [vmem:[%s9 + $0x24] sm:$0xf]
    %v164 = vld [vmem:[%s9 + $0x28] sm:$0xf]
    %v165 = vld [vmem:[%s9 + $0x2c] sm:$0xf]
    %v166 = vld [vmem:[%s9 + $0x30] sm:$0xf]
    %v167 = vld [vmem:[%s9 + $0x34] sm:$0xf]
    %v168 = vld [vmem:[%s9 + $0x38] sm:$0xf]
    %v169 = vld [vmem:[%s9 + $0x3c] sm:$0xf]
    %v170 = vld [vmem:[%s9 + $0x40] sm:$0xf]
    %v171 = vld [vmem:[%s9 + $0x44] sm:$0xf]
    %v172 = vld [vmem:[%s10] sm:$0x1]
    %v173 = vld [vmem:[%s11] sm:$0xf]
    %v174 = vld [vmem:[%s11 + $0x4] sm:$0xf]
    %v175 = vld [vmem:[%s12] sm:$0xf]
    %v176 = vld [vmem:[%s12 + $0x4] sm:$0xf]
    %v177 = vld [vmem:[%s12 + $0x8] sm:$0xf]
    %v178 = vld [vmem:[%s12 + $0xc] sm:$0xf]
    %v179 = vld [vmem:[%s12 + $0x10] sm:$0xf]
    %v180 = vld [vmem:[%s13] sm:$0x1]
    %v181 = vld [vmem:[%s14] sm:$0xf]
    %v182 = vld [vmem:[%s14 + $0x4] sm:$0xf]
    %v183 = vld [vmem:[%s14 + $0x8] sm:$0xf]
    %v184 = vld [vmem:[%s14 + $0xc] sm:$0xf]
    %v185 = vld [vmem:[%s14 + $0x10] sm:$0xf]
    %v186 = vld [vmem:[%s14 + $0x14] sm:$0xf]
    %v187 = vld [vmem:[%s14 + $0x18] sm:$0xf]
    %v188 = vld [vmem:[%s14 + $0x1c] sm:$0xf]
    %v189 = vld [vmem:[%s15] sm:$0x1]
    %v206 = vunpack.c.l.b16 %v55
    %v207 = vunpack.c.h.b16 %v55
    %v208 = vunpack.c.l.b16 %v56
    %v209 = vunpack.c.h.b16 %v56
    %v210 = vunpack.c.l.b16 %v57
    %v211 = vunpack.c.h.b16 %v57
    %v212 = vunpack.c.l.b16 %v58
    %v213 = vunpack.c.h.b16 %v58
    %v214 = vunpack.c.l.b16 %v59
    %v215 = vunpack.c.h.b16 %v59
    %v216 = vunpack.c.l.b16 %v60
    %v217 = vunpack.c.h.b16 %v60
    %v218 = vunpack.c.l.b16 %v61
    %v219 = vunpack.c.h.b16 %v61
    %v220 = vunpack.c.l.b16 %v62
    %v221 = vunpack.c.h.b16 %v62
    %v222 = vunpack.c.l.b16 %v63
    %v223 = vunpack.c.h.b16 %v63
    %v224 = vunpack.c.l.b16 %v64
    %v225 = vunpack.c.h.b16 %v64
    %v226 = vunpack.c.l.b16 %v65
    %v227 = vunpack.c.h.b16 %v65
    %v228 = vunpack.c.l.b16 %v66
    %v229 = vunpack.c.h.b16 %v66
    %v230 = vunpack.c.l.b16 %v67
    %v231 = vunpack.c.h.b16 %v67
    %v232 = vunpack.c.l.b16 %v68
    %v233 = vunpack.c.h.b16 %v68
    %v234 = vunpack.c.l.b16 %v69
    %v235 = vunpack.c.h.b16 %v69
    %v236 = vunpack.c.l.b16 %v70
    %v237 = vunpack.c.h.b16 %v70
    %v238 = vpack.c.b16 %v208, %v206
    %v239 = vpack.c.b16 %v209, %v207
    %v240 = vpack.c.b16 %v212, %v210
    %v241 = vpack.c.b16 %v213, %v211
    %v242 = vpack.c.b16 %v216, %v214
    %v243 = vpack.c.b16 %v217, %v215
    %v244 = vpack.c.b16 %v220, %v218
    %v245 = vpack.c.b16 %v221, %v219
    %v246 = vpack.c.b16 %v224, %v222
    %v247 = vpack.c.b16 %v225, %v223
    %v248 = vpack.c.b16 %v228, %v226
    %v249 = vpack.c.b16 %v229, %v227
    %v250 = vpack.c.b16 %v232, %v230
    %v251 = vpack.c.b16 %v233, %v231
    %v252 = vpack.c.b16 %v236, %v234
    %v253 = vpack.c.b16 %v237, %v235
    %v289 = vunpack.c.l.b16 %v71
    %v290 = vunpack.c.l.b16 %v72
    %v291 = vunpack.c.l.b16 %v73
    %v292 = vunpack.c.l.b16 %v74
    %v293 = vunpack.c.l.b16 %v75
    %v294 = vunpack.c.l.b16 %v76
    %v295 = vunpack.c.l.b16 %v77
    %v296 = vunpack.c.l.b16 %v78
    %v297 = vunpack.c.l.b16 %v79
    %v298 = vunpack.c.l.b16 %v80
    %v299 = vunpack.c.l.b16 %v81
    %v300 = vunpack.c.l.b16 %v82
    %v301 = vunpack.c.l.b16 %v83
    %v302 = vunpack.c.l.b16 %v84
    %v303 = vunpack.c.l.b16 %v85
    %v304 = vunpack.c.l.b16 %v86
    %v305 = vunpack.c.l.b16 %v87
    %v306 = vunpack.c.l.b16 %v88
    %v307 = vunpack.c.l.b16 %v89
    %v308 = vunpack.c.l.b16 %v90
    %v309 = vunpack.c.l.b16 %v91
    %v310 = vunpack.c.l.b16 %v92
    %v311 = vunpack.c.l.b16 %v93
    %v312 = vunpack.c.l.b16 %v94
    %v313 = vunpack.c.l.b16 %v95
    %v314 = vunpack.c.l.b16 %v96
    %v315 = vunpack.c.l.b16 %v97
    %v316 = vpack.c.b16 %v290, %v289
    %v317 = vpack.c.b16 %v292, %v291
    %v318 = vpack.c.b16 %v294, %v293
    %v319 = vpack.c.b16 %v296, %v295
    %v320 = vpack.c.b16 %v298, %v297
    %v321 = vpack.c.b16 %v300, %v299
    %v322 = vpack.c.b16 %v302, %v301
    %v323 = vpack.c.b16 %v304, %v303
    %v324 = vpack.c.b16 %v306, %v305
    %v325 = vpack.c.b16 %v308, %v307
    %v326 = vpack.c.b16 %v310, %v309
    %v327 = vpack.c.b16 %v312, %v311
    %v328 = vpack.c.b16 %v314, %v313
    %v329 = vpack.c.b16 %v315, %v315
    %vm343 = vcmask 719872
    %v345 = vsel %vm343, %v239, 0
    %v348 = vsel %vm343, %v241, 0
    %v351 = vsel %vm343, %v243, 0
    %v354 = vsel %vm343, %v245, 0
    %v357 = vsel %vm343, %v247, 0
    %v360 = vsel %vm343, %v249, 0
    %v363 = vsel %vm343, %v251, 0
    %v366 = vsel %vm343, %v253, 0
    %vm368 = vcmask 1043456
    %v370 = vsel %vm368, %v329, 0
    %372 = vmatprep.subr.bf16.mxu0 0
    %373 = vmatpush1.bf16.msra.mxu0 %v316
    %374 = vmatprep.subr.bf16.mxu0 0
    %375 = vmatpush1.bf16.msra.mxu0 %v317
    %376 = vmatprep.subr.bf16.mxu0 0
    %377 = vmatpush1.bf16.msra.mxu0 %v318
    %378 = vmatprep.subr.bf16.mxu0 0
    %379 = vmatpush1.bf16.msra.mxu0 %v319
    %380 = vmatprep.subr.bf16.mxu0 0
    %381 = vmatpush1.bf16.msra.mxu0 %v320
    %382 = vmatprep.subr.bf16.mxu0 0
    %383 = vmatpush1.bf16.msra.mxu0 %v321
    %384 = vmatprep.subr.bf16.mxu0 0
    %385 = vmatpush1.bf16.msra.mxu0 %v322
    %386 = vmatprep.subr.bf16.mxu0 0
    %387 = vmatpush1.bf16.msra.mxu0 %v323
    %388 = vmatprep.subr.bf16.mxu0 0
    %389 = vmatpush1.bf16.msra.mxu0 %v324
    %390 = vmatprep.subr.bf16.mxu0 0
    %391 = vmatpush1.bf16.msra.mxu0 %v325
    %392 = vmatprep.subr.bf16.mxu0 0
    %393 = vmatpush1.bf16.msra.mxu0 %v326
    %394 = vmatprep.subr.bf16.mxu0 0
    %395 = vmatpush1.bf16.msra.mxu0 %v327
    %396 = vmatprep.subr.bf16.mxu0 0
    %397 = vmatpush1.bf16.msra.mxu0 %v328
    %398 = vmatprep.subr.bf16.mxu0 0
    %399 = vmatpush1.bf16.msra.mxu0 %v370
    %400 = vmatprep.subr.bf16.mxu0 0
    %401 = vmatpush1.bf16.msra.mxu0 0
    %402 = vmatprep.subr.bf16.mxu0 0
    %403 = vmatpush1.bf16.msra.mxu0 0
    %404 = vmatprep.mubr.bf16.mxu0 %v345
    %405 = vmatmul.mubr.bf16.gmra.mrb[0].mxu0 %v238
    %v406 = vpop.f32.mrb[0].mxu0
    %v407 = vadd.f32 0.0, %v406
    %v408 = vpop.f32.mrb[0].mxu0
    %v409 = vpop.f32.mrb[0].mxu0
    %v410 = vadd.f32 0.0, %v409
    %v411 = vpop.f32.mrb[0].mxu0
    %412 = vmatprep.mubr.bf16.mxu0 %v348
    %413 = vmatmul.mubr.bf16.gmra.mrb[0].mxu0 %v240
    %v414 = vpop.f32.mrb[0].mxu0
    %v415 = vadd.f32 0.0, %v414
    %v416 = vpop.f32.mrb[0].mxu0
    %v417 = vpop.f32.mrb[0].mxu0
    %v418 = vadd.f32 0.0, %v417
    %v419 = vpop.f32.mrb[0].mxu0
    %420 = vmatprep.mubr.bf16.mxu0 %v351
    %421 = vmatmul.mubr.bf16.gmra.mrb[0].mxu0 %v242
    %v422 = vpop.f32.mrb[0].mxu0
    %v423 = vadd.f32 0.0, %v422
    %v424 = vpop.f32.mrb[0].mxu0
    %v425 = vpop.f32.mrb[0].mxu0
    %v426 = vadd.f32 0.0, %v425
    %v427 = vpop.f32.mrb[0].mxu0
    %428 = vmatprep.mubr.bf16.mxu0 %v354
    %429 = vmatmul.mubr.bf16.gmra.mrb[0].mxu0 %v244
    %v430 = vpop.f32.mrb[0].mxu0
    %v431 = vadd.f32 0.0, %v430
    %v432 = vpop.f32.mrb[0].mxu0
    %v433 = vpop.f32.mrb[0].mxu0
    %v434 = vadd.f32 0.0, %v433
    %v435 = vpop.f32.mrb[0].mxu0
    %436 = vmatprep.mubr.bf16.mxu0 %v357
    %437 = vmatmul.mubr.bf16.gmra.mrb[0].mxu0 %v246
    %v438 = vpop.f32.mrb[0].mxu0
    %v439 = vadd.f32 0.0, %v438
    %v440 = vpop.f32.mrb[0].mxu0
    %v441 = vpop.f32.mrb[0].mxu0
    %v442 = vadd.f32 0.0, %v441
    %v443 = vpop.f32.mrb[0].mxu0
    %444 = vmatprep.mubr.bf16.mxu0 %v360
    %445 = vmatmul.mubr.bf16.gmra.mrb[0].mxu0 %v248
    %v446 = vpop.f32.mrb[0].mxu0
    %v447 = vadd.f32 0.0, %v446
    %v448 = vpop.f32.mrb[0].mxu0
    %v449 = vpop.f32.mrb[0].mxu0
    %v450 = vadd.f32 0.0, %v449
    %v451 = vpop.f32.mrb[0].mxu0
    %452 = vmatprep.mubr.bf16.mxu0 %v363
    %453 = vmatmul.mubr.bf16.gmra.mrb[0].mxu0 %v250
    %v454 = vpop.f32.mrb[0].mxu0
    %v455 = vadd.f32 0.0, %v454
    %v456 = vpop.f32.mrb[0].mxu0
    %v457 = vpop.f32.mrb[0].mxu0
    %v458 = vadd.f32 0.0, %v457
    %v459 = vpop.f32.mrb[0].mxu0
    %460 = vmatprep.mubr.bf16.mxu0 %v366
    %461 = vmatmul.mubr.bf16.gmra.mrb[0].mxu0 %v252
    %v462 = vpop.f32.mrb[0].mxu0
    %v463 = vadd.f32 0.0, %v462
    %v464 = vpop.f32.mrb[0].mxu0
    %v465 = vpop.f32.mrb[0].mxu0
    %v466 = vadd.f32 0.0, %v465
    %v467 = vpop.f32.mrb[0].mxu0
    %468 = vdwg.mxu0
    %v469 = vmax.f32 %v407, 0.0
    %v470 = vmax.f32 %v410, 0.0
    %v471 = vmax.f32 %v415, 0.0
    %v472 = vmax.f32 %v418, 0.0
    %v473 = vmax.f32 %v423, 0.0
    %v474 = vmax.f32 %v426, 0.0
    %v475 = vmax.f32 %v431, 0.0
    %v476 = vmax.f32 %v434, 0.0
    %v477 = vmax.f32 %v439, 0.0
    %v478 = vmax.f32 %v442, 0.0
    %v479 = vmax.f32 %v447, 0.0
    %v480 = vmax.f32 %v450, 0.0
    %v481 = vmax.f32 %v455, 0.0
    %v482 = vmax.f32 %v458, 0.0
    %v483 = vmax.f32 %v463, 0.0
    %v484 = vmax.f32 %v466, 0.0
    %v485 = vpack.c.bf16 %v470, %v469
    %v486 = vpack.c.bf16 %v472, %v471
    %v487 = vpack.c.bf16 %v474, %v473
    %v488 = vpack.c.bf16 %v476, %v475
    %v489 = vpack.c.bf16 %v478, %v477
    %v490 = vpack.c.bf16 %v480, %v479
    %v491 = vpack.c.bf16 %v482, %v481
    %v492 = vpack.c.bf16 %v484, %v483
    %v494 = vlaneseq
    %v495 = vshrl.u32 %v494, 7
    %v496 = vsub.s32 0, %v495
    %v497 = vrot.slane %v107, %v496
    %v508 = vunpack.c.l.b16 %v98
    %v509 = vunpack.c.l.b16 %v99
    %v510 = vunpack.c.l.b16 %v100
    %v511 = vunpack.c.l.b16 %v101
    %v512 = vunpack.c.l.b16 %v102
    %v513 = vunpack.c.l.b16 %v103
    %v514 = vunpack.c.l.b16 %v104
    %v515 = vunpack.c.l.b16 %v105
    %v516 = vunpack.c.l.b16 %v106
    %v517 = vpack.c.b16 %v509, %v508
    %v518 = vpack.c.b16 %v511, %v510
    %v519 = vpack.c.b16 %v513, %v512
    %v520 = vpack.c.b16 %v515, %v514
    %v521 = vpack.c.b16 %v516, %v516
    %vm526 = vcmask 588800
    %v528 = vsel %vm526, %v485, 0
    %v531 = vsel %vm526, %v486, 0
    %v534 = vsel %vm526, %v487, 0
    %v537 = vsel %vm526, %v488, 0
    %v540 = vsel %vm526, %v489, 0
    %v543 = vsel %vm526, %v490, 0
    %v546 = vsel %vm526, %v491, 0
    %v549 = vsel %vm526, %v492, 0
    %v552 = vsel %vm368, %v521, 0
    %554 = vmatprep.subr.bf16.mxu0 0
    %555 = vmatpush1.bf16.msra.mxu0 %v517
    %556 = vmatprep.subr.bf16.mxu0 0
    %557 = vmatpush1.bf16.msra.mxu0 %v518
    %558 = vmatprep.subr.bf16.mxu0 0
    %559 = vmatpush1.bf16.msra.mxu0 %v519
    %560 = vmatprep.subr.bf16.mxu0 0
    %561 = vmatpush1.bf16.msra.mxu0 %v520
    %562 = vmatprep.subr.bf16.mxu0 0
    %563 = vmatpush1.bf16.msra.mxu0 %v552
    %564 = vmatprep.subr.bf16.mxu0 0
    %565 = vmatpush1.bf16.msra.mxu0 0
    %566 = vmatprep.subr.bf16.mxu0 0
    %567 = vmatpush1.bf16.msra.mxu0 0
    %568 = vmatprep.subr.bf16.mxu0 0
    %569 = vmatpush1.bf16.msra.mxu0 0
    %570 = vmatprep.subr.bf16.mxu0 0
    %571 = vmatpush1.bf16.msra.mxu0 0
    %572 = vmatprep.subr.bf16.mxu0 0
    %573 = vmatpush1.bf16.msra.mxu0 0
    %574 = vmatprep.subr.bf16.mxu0 0
    %575 = vmatpush1.bf16.msra.mxu0 0
    %576 = vmatprep.subr.bf16.mxu0 0
    %577 = vmatpush1.bf16.msra.mxu0 0
    %578 = vmatprep.subr.bf16.mxu0 0
    %579 = vmatpush1.bf16.msra.mxu0 0
    %580 = vmatprep.subr.bf16.mxu0 0
    %581 = vmatpush1.bf16.msra.mxu0 0
    %582 = vmatprep.subr.bf16.mxu0 0
    %583 = vmatpush1.bf16.msra.mxu0 0
    %584 = vmatprep.subr.bf16.mxu0 0
    %585 = vmatpush1.bf16.msra.mxu0 0
    %586 = vmatprep.mubr.bf16.mxu0 0
    %587 = vmatmul.mubr.bf16.gmra.mrb[0].mxu0 %v528
    %v588 = vpop.f32.mrb[0].mxu0
    %v589 = vadd.f32 %v497, %v588
    %v590 = vpop.f32.mrb[0].mxu0
    %v591 = vpop.f32.mrb[0].mxu0
    %v592 = vadd.f32 %v497, %v591
    %v593 = vpop.f32.mrb[0].mxu0
    %594 = vmatprep.mubr.bf16.mxu0 0
    %595 = vmatmul.mubr.bf16.gmra.mrb[0].mxu0 %v531
    %v596 = vpop.f32.mrb[0].mxu0
    %v597 = vadd.f32 %v497, %v596
    %v598 = vpop.f32.mrb[0].mxu0
    %v599 = vpop.f32.mrb[0].mxu0
    %v600 = vadd.f32 %v497, %v599
    %v601 = vpop.f32.mrb[0].mxu0
    %602 = vmatprep.mubr.bf16.mxu0 0
    %603 = vmatmul.mubr.bf16.gmra.mrb[0].mxu0 %v534
    %v604 = vpop.f32.mrb[0].mxu0
    %v605 = vadd.f32 %v497, %v604
    %v606 = vpop.f32.mrb[0].mxu0
    %v607 = vpop.f32.mrb[0].mxu0
    %v608 = vadd.f32 %v497, %v607
    %v609 = vpop.f32.mrb[0].mxu0
    %610 = vmatprep.mubr.bf16.mxu0 0
    %611 = vmatmul.mubr.bf16.gmra.mrb[0].mxu0 %v537
    %v612 = vpop.f32.mrb[0].mxu0
    %v613 = vadd.f32 %v497, %v612
    %v614 = vpop.f32.mrb[0].mxu0
    %v615 = vpop.f32.mrb[0].mxu0
    %v616 = vadd.f32 %v497, %v615
    %v617 = vpop.f32.mrb[0].mxu0
    %618 = vmatprep.mubr.bf16.mxu0 0
    %619 = vmatmul.mubr.bf16.gmra.mrb[0].mxu0 %v540
    %v620 = vpop.f32.mrb[0].mxu0
    %v621 = vadd.f32 %v497, %v620
    %v622 = vpop.f32.mrb[0].mxu0
    %v623 = vpop.f32.mrb[0].mxu0
    %v624 = vadd.f32 %v497, %v623
    %v625 = vpop.f32.mrb[0].mxu0
    %626 = vmatprep.mubr.bf16.mxu0 0
    %627 = vmatmul.mubr.bf16.gmra.mrb[0].mxu0 %v543
    %v628 = vpop.f32.mrb[0].mxu0
    %v629 = vadd.f32 %v497, %v628
    %v630 = vpop.f32.mrb[0].mxu0
    %v631 = vpop.f32.mrb[0].mxu0
    %v632 = vadd.f32 %v497, %v631
    %v633 = vpop.f32.mrb[0].mxu0
    %634 = vmatprep.mubr.bf16.mxu0 0
    %635 = vmatmul.mubr.bf16.gmra.mrb[0].mxu0 %v546
    %v636 = vpop.f32.mrb[0].mxu0
    %v637 = vadd.f32 %v497, %v636
    %v638 = vpop.f32.mrb[0].mxu0
    %v639 = vpop.f32.mrb[0].mxu0
    %v640 = vadd.f32 %v497, %v639
    %v641 = vpop.f32.mrb[0].mxu0
    %642 = vmatprep.mubr.bf16.mxu0 0
    %643 = vmatmul.mubr.bf16.gmra.mrb[0].mxu0 %v549
    %v644 = vpop.f32.mrb[0].mxu0
    %v645 = vadd.f32 %v497, %v644
    %v646 = vpop.f32.mrb[0].mxu0
    %v647 = vpop.f32.mrb[0].mxu0
    %v648 = vadd.f32 %v497, %v647
    %v649 = vpop.f32.mrb[0].mxu0
    %650 = vdwg.mxu0
    %v651 = vmax.f32 %v589, 0.0
    %v652 = vmax.f32 %v592, 0.0
    %v653 = vmax.f32 %v597, 0.0
    %v654 = vmax.f32 %v600, 0.0
    %v655 = vmax.f32 %v605, 0.0
    %v656 = vmax.f32 %v608, 0.0
    %v657 = vmax.f32 %v613, 0.0
    %v658 = vmax.f32 %v616, 0.0
    %v659 = vmax.f32 %v621, 0.0
    %v660 = vmax.f32 %v624, 0.0
    %v661 = vmax.f32 %v629, 0.0
    %v662 = vmax.f32 %v632, 0.0
    %v663 = vmax.f32 %v637, 0.0
    %v664 = vmax.f32 %v640, 0.0
    %v665 = vmax.f32 %v645, 0.0
    %v666 = vmax.f32 %v648, 0.0
    %v667 = vpack.c.bf16 %v652, %v651
    %v668 = vpack.c.bf16 %v654, %v653
    %v669 = vpack.c.bf16 %v656, %v655
    %v670 = vpack.c.bf16 %v658, %v657
    %v671 = vpack.c.bf16 %v660, %v659
    %v672 = vpack.c.bf16 %v662, %v661
    %v673 = vpack.c.bf16 %v664, %v663
    %v674 = vpack.c.bf16 %v666, %v665
    %v678 = vunpack.c.l.b16 %v109
    %v679 = vunpack.c.l.b16 %v110
    %v680 = vunpack.c.l.b16 %v111
    %v681 = vpack.c.b16 %v679, %v678
    %v682 = vpack.c.b16 %v680, %v680
    %vm684 = vcmask 195584
    %v686 = vsel %vm684, %v238, 0
    %v689 = vsel %vm684, %v240, 0
    %v692 = vsel %vm684, %v242, 0
    %v695 = vsel %vm684, %v244, 0
    %v698 = vsel %vm684, %v246, 0
    %v701 = vsel %vm684, %v248, 0
    %v704 = vsel %vm684, %v250, 0
    %v707 = vsel %vm684, %v252, 0
    %v710 = vsel %vm368, %v682, 0
    %712 = vmatprep.subr.bf16.mxu0 0
    %713 = vmatpush1.bf16.msra.mxu0 %v681
    %714 = vmatprep.subr.bf16.mxu0 0
    %715 = vmatpush1.bf16.msra.mxu0 %v710
    %716 = vmatprep.subr.bf16.mxu0 0
    %717 = vmatpush1.bf16.msra.mxu0 0
    %718 = vmatprep.subr.bf16.mxu0 0
    %719 = vmatpush1.bf16.msra.mxu0 0
    %720 = vmatprep.subr.bf16.mxu0 0
    %721 = vmatpush1.bf16.msra.mxu0 0
    %722 = vmatprep.subr.bf16.mxu0 0
    %723 = vmatpush1.bf16.msra.mxu0 0
    %724 = vmatprep.subr.bf16.mxu0 0
    %725 = vmatpush1.bf16.msra.mxu0 0
    %726 = vmatprep.subr.bf16.mxu0 0
    %727 = vmatpush1.bf16.msra.mxu0 0
    %728 = vmatprep.subr.bf16.mxu0 0
    %729 = vmatpush1.bf16.msra.mxu0 0
    %730 = vmatprep.subr.bf16.mxu0 0
    %731 = vmatpush1.bf16.msra.mxu0 0
    %732 = vmatprep.subr.bf16.mxu0 0
    %733 = vmatpush1.bf16.msra.mxu0 0
    %734 = vmatprep.subr.bf16.mxu0 0
    %735 = vmatpush1.bf16.msra.mxu0 0
    %736 = vmatprep.subr.bf16.mxu0 0
    %737 = vmatpush1.bf16.msra.mxu0 0
    %738 = vmatprep.subr.bf16.mxu0 0
    %739 = vmatpush1.bf16.msra.mxu0 0
    %740 = vmatprep.subr.bf16.mxu0 0
    %741 = vmatpush1.bf16.msra.mxu0 0
    %742 = vmatprep.subr.bf16.mxu0 0
    %743 = vmatpush1.bf16.msra.mxu0 0
    %744 = vmatprep.mubr.bf16.mxu0 0
    %745 = vmatmul.mubr.bf16.gmra.mrb[0].mxu0 %v686
    %v746 = vpop.f32.mrb[0].mxu0
    %v747 = vadd.f32 0.0, %v746
    %v748 = vpop.f32.mrb[0].mxu0
    %v749 = vpop.f32.mrb[0].mxu0
    %v750 = vadd.f32 0.0, %v749
    %v751 = vpop.f32.mrb[0].mxu0
    %752 = vmatprep.mubr.bf16.mxu0 0
    %753 = vmatmul.mubr.bf16.gmra.mrb[0].mxu0 %v689
    %v754 = vpop.f32.mrb[0].mxu0
    %v755 = vadd.f32 0.0, %v754
    %v756 = vpop.f32.mrb[0].mxu0
    %v757 = vpop.f32.mrb[0].mxu0
    %v758 = vadd.f32 0.0, %v757
    %v759 = vpop.f32.mrb[0].mxu0
    %760 = vmatprep.mubr.bf16.mxu0 0
    %761 = vmatmul.mubr.bf16.gmra.mrb[0].mxu0 %v692
    %v762 = vpop.f32.mrb[0].mxu0
    %v763 = vadd.f32 0.0, %v762
    %v764 = vpop.f32.mrb[0].mxu0
    %v765 = vpop.f32.mrb[0].mxu0
    %v766 = vadd.f32 0.0, %v765
    %v767 = vpop.f32.mrb[0].mxu0
    %768 = vmatprep.mubr.bf16.mxu0 0
    %769 = vmatmul.mubr.bf16.gmra.mrb[0].mxu0 %v695
    %v770 = vpop.f32.mrb[0].mxu0
    %v771 = vadd.f32 0.0, %v770
    %v772 = vpop.f32.mrb[0].mxu0
    %v773 = vpop.f32.mrb[0].mxu0
    %v774 = vadd.f32 0.0, %v773
    %v775 = vpop.f32.mrb[0].mxu0
    %776 = vmatprep.mubr.bf16.mxu0 0
    %777 = vmatmul.mubr.bf16.gmra.mrb[0].mxu0 %v698
    %v778 = vpop.f32.mrb[0].mxu0
    %v779 = vadd.f32 0.0, %v778
    %v780 = vpop.f32.mrb[0].mxu0
    %v781 = vpop.f32.mrb[0].mxu0
    %v782 = vadd.f32 0.0, %v781
    %v783 = vpop.f32.mrb[0].mxu0
    %784 = vmatprep.mubr.bf16.mxu0 0
    %785 = vmatmul.mubr.bf16.gmra.mrb[0].mxu0 %v701
    %v786 = vpop.f32.mrb[0].mxu0
    %v787 = vadd.f32 0.0, %v786
    %v788 = vpop.f32.mrb[0].mxu0
    %v789 = vpop.f32.mrb[0].mxu0
    %v790 = vadd.f32 0.0, %v789
    %v791 = vpop.f32.mrb[0].mxu0
    %792 = vmatprep.mubr.bf16.mxu0 0
    %793 = vmatmul.mubr.bf16.gmra.mrb[0].mxu0 %v704
    %v794 = vpop.f32.mrb[0].mxu0
    %v795 = vadd.f32 0.0, %v794
    %v796 = vpop.f32.mrb[0].mxu0
    %v797 = vpop.f32.mrb[0].mxu0
    %v798 = vadd.f32 0.0, %v797
    %v799 = vpop.f32.mrb[0].mxu0
    %800 = vmatprep.mubr.bf16.mxu0 0
    %801 = vmatmul.mubr.bf16.gmra.mrb[0].mxu0 %v707
    %v802 = vpop.f32.mrb[0].mxu0
    %v803 = vadd.f32 0.0, %v802
    %v804 = vpop.f32.mrb[0].mxu0
    %v805 = vpop.f32.mrb[0].mxu0
    %v806 = vadd.f32 0.0, %v805
    %v807 = vpop.f32.mrb[0].mxu0
    %808 = vdwg.mxu0
    %vm809 = vcmask 64512
    %v811 = vsel %vm809, %v667, 0
    %v814 = vsel %vm809, %v668, 0
    %v817 = vsel %vm809, %v669, 0
    %v820 = vsel %vm809, %v670, 0
    %v823 = vsel %vm809, %v671, 0
    %v826 = vsel %vm809, %v672, 0
    %v829 = vsel %vm809, %v673, 0
    %v832 = vsel %vm809, %v674, 0
    %v835 = vsel %vm368, %v108, 0
    %837 = vmatprep.subr.bf16.mxu0 0
    %838 = vmatpush1.bf16.msra.mxu0 %v835
    %839 = vmatprep.subr.bf16.mxu0 0
    %840 = vmatpush1.bf16.msra.mxu0 0
    %841 = vmatprep.subr.bf16.mxu0 0
    %842 = vmatpush1.bf16.msra.mxu0 0
    %843 = vmatprep.subr.bf16.mxu0 0
    %844 = vmatpush1.bf16.msra.mxu0 0
    %845 = vmatprep.subr.bf16.mxu0 0
    %846 = vmatpush1.bf16.msra.mxu0 0
    %847 = vmatprep.subr.bf16.mxu0 0
    %848 = vmatpush1.bf16.msra.mxu0 0
    %849 = vmatprep.subr.bf16.mxu0 0
    %850 = vmatpush1.bf16.msra.mxu0 0
    %851 = vmatprep.subr.bf16.mxu0 0
    %852 = vmatpush1.bf16.msra.mxu0 0
    %853 = vmatprep.subr.bf16.mxu0 0
    %854 = vmatpush1.bf16.msra.mxu0 0
    %855 = vmatprep.subr.bf16.mxu0 0
    %856 = vmatpush1.bf16.msra.mxu0 0
    %857 = vmatprep.subr.bf16.mxu0 0
    %858 = vmatpush1.bf16.msra.mxu0 0
    %859 = vmatprep.subr.bf16.mxu0 0
    %860 = vmatpush1.bf16.msra.mxu0 0
    %861 = vmatprep.subr.bf16.mxu0 0
    %862 = vmatpush1.bf16.msra.mxu0 0
    %863 = vmatprep.subr.bf16.mxu0 0
    %864 = vmatpush1.bf16.msra.mxu0 0
    %865 = vmatprep.subr.bf16.mxu0 0
    %866 = vmatpush1.bf16.msra.mxu0 0
    %867 = vmatprep.subr.bf16.mxu0 0
    %868 = vmatpush1.bf16.msra.mxu0 0
    %869 = vmatprep.mubr.bf16.mxu0 0
    %870 = vmatmul.mubr.bf16.gmra.mrb[0].mxu0 %v811
    %v871 = vpop.f32.mrb[0].mxu0
    %v872 = vadd.f32 %v747, %v871
    %v873 = vpop.f32.mrb[0].mxu0
    %v874 = vpop.f32.mrb[0].mxu0
    %v875 = vadd.f32 %v750, %v874
    %v876 = vpop.f32.mrb[0].mxu0
    %877 = vmatprep.mubr.bf16.mxu0 0
    %878 = vmatmul.mubr.bf16.gmra.mrb[0].mxu0 %v814
    %v879 = vpop.f32.mrb[0].mxu0
    %v880 = vadd.f32 %v755, %v879
    %v881 = vpop.f32.mrb[0].mxu0
    %v882 = vpop.f32.mrb[0].mxu0
    %v883 = vadd.f32 %v758, %v882
    %v884 = vpop.f32.mrb[0].mxu0
    %885 = vmatprep.mubr.bf16.mxu0 0
    %886 = vmatmul.mubr.bf16.gmra.mrb[0].mxu0 %v817
    %v887 = vpop.f32.mrb[0].mxu0
    %v888 = vadd.f32 %v763, %v887
    %v889 = vpop.f32.mrb[0].mxu0
    %v890 = vpop.f32.mrb[0].mxu0
    %v891 = vadd.f32 %v766, %v890
    %v892 = vpop.f32.mrb[0].mxu0
    %893 = vmatprep.mubr.bf16.mxu0 0
    %894 = vmatmul.mubr.bf16.gmra.mrb[0].mxu0 %v820
    %v895 = vpop.f32.mrb[0].mxu0
    %v896 = vadd.f32 %v771, %v895
    %v897 = vpop.f32.mrb[0].mxu0
    %v898 = vpop.f32.mrb[0].mxu0
    %v899 = vadd.f32 %v774, %v898
    %v900 = vpop.f32.mrb[0].mxu0
    %901 = vmatprep.mubr.bf16.mxu0 0
    %902 = vmatmul.mubr.bf16.gmra.mrb[0].mxu0 %v823
    %v903 = vpop.f32.mrb[0].mxu0
    %v904 = vadd.f32 %v779, %v903
    %v905 = vpop.f32.mrb[0].mxu0
    %v906 = vpop.f32.mrb[0].mxu0
    %v907 = vadd.f32 %v782, %v906
    %v908 = vpop.f32.mrb[0].mxu0
    %909 = vmatprep.mubr.bf16.mxu0 0
    %910 = vmatmul.mubr.bf16.gmra.mrb[0].mxu0 %v826
    %v911 = vpop.f32.mrb[0].mxu0
    %v912 = vadd.f32 %v787, %v911
    %v913 = vpop.f32.mrb[0].mxu0
    %v914 = vpop.f32.mrb[0].mxu0
    %v915 = vadd.f32 %v790, %v914
    %v916 = vpop.f32.mrb[0].mxu0
    %917 = vmatprep.mubr.bf16.mxu0 0
    %918 = vmatmul.mubr.bf16.gmra.mrb[0].mxu0 %v829
    %v919 = vpop.f32.mrb[0].mxu0
    %v920 = vadd.f32 %v795, %v919
    %v921 = vpop.f32.mrb[0].mxu0
    %v922 = vpop.f32.mrb[0].mxu0
    %v923 = vadd.f32 %v798, %v922
    %v924 = vpop.f32.mrb[0].mxu0
    %925 = vmatprep.mubr.bf16.mxu0 0
    %926 = vmatmul.mubr.bf16.gmra.mrb[0].mxu0 %v832
    %v927 = vpop.f32.mrb[0].mxu0
    %v928 = vadd.f32 %v803, %v927
    %v929 = vpop.f32.mrb[0].mxu0
    %v930 = vpop.f32.mrb[0].mxu0
    %v931 = vadd.f32 %v806, %v930
    %v932 = vpop.f32.mrb[0].mxu0
    %933 = vdwg.mxu0
    %v935 = vlaneseq
    %v936 = vshrl.u32 %v935, 7
    %v937 = vsub.s32 0, %v936
    %v938 = vrot.slane %v112, %v937
    %v940 = vadd.f32 %v872, %v938
    %v941 = vadd.f32 %v875, %v938
    %v942 = vadd.f32 %v880, %v938
    %v943 = vadd.f32 %v883, %v938
    %v944 = vadd.f32 %v888, %v938
    %v945 = vadd.f32 %v891, %v938
    %v946 = vadd.f32 %v896, %v938
    %v947 = vadd.f32 %v899, %v938
    %v948 = vadd.f32 %v904, %v938
    %v949 = vadd.f32 %v907, %v938
    %v950 = vadd.f32 %v912, %v938
    %v951 = vadd.f32 %v915, %v938
    %v952 = vadd.f32 %v920, %v938
    %v953 = vadd.f32 %v923, %v938
    %v954 = vadd.f32 %v928, %v938
    %v955 = vadd.f32 %v931, %v938
    %v956 = vmax.f32 %v940, 0.0
    %v957 = vmax.f32 %v941, 0.0
    %v958 = vmax.f32 %v942, 0.0
    %v959 = vmax.f32 %v943, 0.0
    %v960 = vmax.f32 %v944, 0.0
    %v961 = vmax.f32 %v945, 0.0
    %v962 = vmax.f32 %v946, 0.0
    %v963 = vmax.f32 %v947, 0.0
    %v964 = vmax.f32 %v948, 0.0
    %v965 = vmax.f32 %v949, 0.0
    %v966 = vmax.f32 %v950, 0.0
    %v967 = vmax.f32 %v951, 0.0
    %v968 = vmax.f32 %v952, 0.0
    %v969 = vmax.f32 %v953, 0.0
    %v970 = vmax.f32 %v954, 0.0
    %v971 = vmax.f32 %v955, 0.0
    %v972 = vpack.c.bf16 %v957, %v956
    %v973 = vpack.c.bf16 %v959, %v958
    %v974 = vpack.c.bf16 %v961, %v960
    %v975 = vpack.c.bf16 %v963, %v962
    %v976 = vpack.c.bf16 %v965, %v964
    %v977 = vpack.c.bf16 %v967, %v966
    %v978 = vpack.c.bf16 %v969, %v968
    %v979 = vpack.c.bf16 %v971, %v970
    %v1016 = vunpack.c.l.b16 %v113
    %v1017 = vunpack.c.l.b16 %v114
    %v1018 = vunpack.c.l.b16 %v115
    %v1019 = vunpack.c.l.b16 %v116
    %v1020 = vunpack.c.l.b16 %v117
    %v1021 = vunpack.c.l.b16 %v118
    %v1022 = vunpack.c.l.b16 %v119
    %v1023 = vunpack.c.l.b16 %v120
    %v1024 = vunpack.c.l.b16 %v121
    %v1025 = vunpack.c.l.b16 %v122
    %v1026 = vunpack.c.l.b16 %v123
    %v1027 = vunpack.c.l.b16 %v124
    %v1028 = vunpack.c.l.b16 %v125
    %v1029 = vunpack.c.l.b16 %v126
    %v1030 = vunpack.c.l.b16 %v127
    %v1031 = vunpack.c.l.b16 %v128
    %v1032 = vunpack.c.l.b16 %v129
    %v1033 = vunpack.c.l.b16 %v130
    %v1034 = vunpack.c.l.b16 %v131
    %v1035 = vunpack.c.l.b16 %v132
    %v1036 = vunpack.c.l.b16 %v133
    %v1037 = vunpack.c.l.b16 %v134
    %v1038 = vunpack.c.l.b16 %v135
    %v1039 = vunpack.c.l.b16 %v136
    %v1040 = vunpack.c.l.b16 %v137
    %v1041 = vunpack.c.l.b16 %v138
    %v1042 = vunpack.c.l.b16 %v139
    %v1043 = vunpack.c.l.b16 %v140
    %v1044 = vunpack.c.l.b16 %v141
    %v1045 = vunpack.c.l.b16 %v142
    %v1046 = vunpack.c.l.b16 %v143
    %v1047 = vunpack.c.l.b16 %v144
    %v1048 = vunpack.c.l.b16 %v145
    %v1049 = vunpack.c.l.b16 %v146
    %v1050 = vunpack.c.l.b16 %v147
    %v1051 = vunpack.c.l.b16 %v148
    %v1052 = vpack.c.b16 %v1017, %v1016
    %v1053 = vpack.c.b16 %v1019, %v1018
    %v1054 = vpack.c.b16 %v1021, %v1020
    %v1055 = vpack.c.b16 %v1023, %v1022
    %v1056 = vpack.c.b16 %v1025, %v1024
    %v1057 = vpack.c.b16 %v1027, %v1026
    %v1058 = vpack.c.b16 %v1029, %v1028
    %v1059 = vpack.c.b16 %v1031, %v1030
    %v1060 = vpack.c.b16 %v1033, %v1032
    %v1061 = vpack.c.b16 %v1035, %v1034
    %v1062 = vpack.c.b16 %v1037, %v1036
    %v1063 = vpack.c.b16 %v1039, %v1038
    %v1064 = vpack.c.b16 %v1041, %v1040
    %v1065 = vpack.c.b16 %v1043, %v1042
    %v1066 = vpack.c.b16 %v1045, %v1044
    %v1067 = vpack.c.b16 %v1047, %v1046
    %v1068 = vpack.c.b16 %v1049, %v1048
    %v1069 = vpack.c.b16 %v1051, %v1050
    %1088 = vmatprep.subr.bf16.mxu0 0
    %1089 = vmatpush1.bf16.msra.mxu0 %v972
    %1090 = vmatprep.subr.bf16.mxu0 0
    %1091 = vmatpush1.bf16.msra.mxu0 %v973
    %1092 = vmatprep.subr.bf16.mxu0 0
    %1093 = vmatpush1.bf16.msra.mxu0 %v974
    %1094 = vmatprep.subr.bf16.mxu0 0
    %1095 = vmatpush1.bf16.msra.mxu0 %v975
    %1096 = vmatprep.subr.bf16.mxu0 0
    %1097 = vmatpush1.bf16.msra.mxu0 %v976
    %1098 = vmatprep.subr.bf16.mxu0 0
    %1099 = vmatpush1.bf16.msra.mxu0 %v977
    %1100 = vmatprep.subr.bf16.mxu0 0
    %1101 = vmatpush1.bf16.msra.mxu0 %v978
    %1102 = vmatprep.subr.bf16.mxu0 0
    %1103 = vmatpush1.bf16.msra.mxu0 %v979
    %1104 = vmatprep.subr.bf16.mxu0 0
    %1105 = vmatpush1.bf16.msra.mxu0 0
    %1106 = vmatprep.subr.bf16.mxu0 0
    %1107 = vmatpush1.bf16.msra.mxu0 0
    %1108 = vmatprep.subr.bf16.mxu0 0
    %1109 = vmatpush1.bf16.msra.mxu0 0
    %1110 = vmatprep.subr.bf16.mxu0 0
    %1111 = vmatpush1.bf16.msra.mxu0 0
    %1112 = vmatprep.subr.bf16.mxu0 0
    %1113 = vmatpush1.bf16.msra.mxu0 0
    %1114 = vmatprep.subr.bf16.mxu0 0
    %1115 = vmatpush1.bf16.msra.mxu0 0
    %1116 = vmatprep.subr.bf16.mxu0 0
    %1117 = vmatpush1.bf16.msra.mxu0 0
    %1118 = vmatprep.subr.bf16.mxu0 0
    %1119 = vmatpush1.bf16.msra.mxu0 0
    %1120 = vmatprep.mubr.bf16.mxu0 0
    %1121 = vmatmul.mubr.bf16.gmra.mrb[0].mxu0 %v1052
    %v1122 = vpop.f32.mrb[0].mxu0
    %v1123 = vadd.f32 0.0, %v1122
    %v1124 = vpop.f32.mrb[0].mxu0
    %v1125 = vpop.f32.mrb[0].mxu0
    %v1126 = vadd.f32 0.0, %v1125
    %v1127 = vpop.f32.mrb[0].mxu0
    %1128 = vmatprep.mubr.bf16.mxu0 0
    %1129 = vmatmul.mubr.bf16.gmra.mrb[0].mxu0 %v1053
    %v1130 = vpop.f32.mrb[0].mxu0
    %v1131 = vadd.f32 0.0, %v1130
    %v1132 = vpop.f32.mrb[0].mxu0
    %v1133 = vpop.f32.mrb[0].mxu0
    %v1134 = vadd.f32 0.0, %v1133
    %v1135 = vpop.f32.mrb[0].mxu0
    %1136 = vmatprep.mubr.bf16.mxu0 0
    %1137 = vmatmul.mubr.bf16.gmra.mrb[0].mxu0 %v1054
    %v1138 = vpop.f32.mrb[0].mxu0
    %v1139 = vadd.f32 0.0, %v1138
    %v1140 = vpop.f32.mrb[0].mxu0
    %v1141 = vpop.f32.mrb[0].mxu0
    %v1142 = vadd.f32 0.0, %v1141
    %v1143 = vpop.f32.mrb[0].mxu0
    %1144 = vmatprep.mubr.bf16.mxu0 0
    %1145 = vmatmul.mubr.bf16.gmra.mrb[0].mxu0 %v1055
    %v1146 = vpop.f32.mrb[0].mxu0
    %v1147 = vadd.f32 0.0, %v1146
    %v1148 = vpop.f32.mrb[0].mxu0
    %v1149 = vpop.f32.mrb[0].mxu0
    %v1150 = vadd.f32 0.0, %v1149
    %v1151 = vpop.f32.mrb[0].mxu0
    %1152 = vmatprep.mubr.bf16.mxu0 0
    %1153 = vmatmul.mubr.bf16.gmra.mrb[0].mxu0 %v1056
    %v1154 = vpop.f32.mrb[0].mxu0
    %v1155 = vadd.f32 0.0, %v1154
    %v1156 = vpop.f32.mrb[0].mxu0
    %v1157 = vpop.f32.mrb[0].mxu0
    %v1158 = vadd.f32 0.0, %v1157
    %v1159 = vpop.f32.mrb[0].mxu0
    %1160 = vmatprep.mubr.bf16.mxu0 0
    %1161 = vmatmul.mubr.bf16.gmra.mrb[0].mxu0 %v1057
    %v1162 = vpop.f32.mrb[0].mxu0
    %v1163 = vadd.f32 0.0, %v1162
    %v1164 = vpop.f32.mrb[0].mxu0
    %v1165 = vpop.f32.mrb[0].mxu0
    %v1166 = vadd.f32 0.0, %v1165
    %v1167 = vpop.f32.mrb[0].mxu0
    %1168 = vmatprep.mubr.bf16.mxu0 0
    %1169 = vmatmul.mubr.bf16.gmra.mrb[0].mxu0 %v1058
    %v1170 = vpop.f32.mrb[0].mxu0
    %v1171 = vadd.f32 0.0, %v1170
    %v1172 = vpop.f32.mrb[0].mxu0
    %v1173 = vpop.f32.mrb[0].mxu0
    %v1174 = vadd.f32 0.0, %v1173
    %v1175 = vpop.f32.mrb[0].mxu0
    %1176 = vmatprep.mubr.bf16.mxu0 0
    %1177 = vmatmul.mubr.bf16.gmra.mrb[0].mxu0 %v1059
    %v1178 = vpop.f32.mrb[0].mxu0
    %v1179 = vadd.f32 0.0, %v1178
    %v1180 = vpop.f32.mrb[0].mxu0
    %v1181 = vpop.f32.mrb[0].mxu0
    %v1182 = vadd.f32 0.0, %v1181
    %v1183 = vpop.f32.mrb[0].mxu0
    %1184 = vmatprep.mubr.bf16.mxu0 0
    %1185 = vmatmul.mubr.bf16.gmra.mrb[0].mxu0 %v1060
    %v1186 = vpop.f32.mrb[0].mxu0
    %v1187 = vadd.f32 0.0, %v1186
    %v1188 = vpop.f32.mrb[0].mxu0
    %v1189 = vpop.f32.mrb[0].mxu0
    %v1190 = vadd.f32 0.0, %v1189
    %v1191 = vpop.f32.mrb[0].mxu0
    %1192 = vmatprep.mubr.bf16.mxu0 0
    %1193 = vmatmul.mubr.bf16.gmra.mrb[0].mxu0 %v1061
    %v1194 = vpop.f32.mrb[0].mxu0
    %v1195 = vadd.f32 0.0, %v1194
    %v1196 = vpop.f32.mrb[0].mxu0
    %v1197 = vpop.f32.mrb[0].mxu0
    %v1198 = vadd.f32 0.0, %v1197
    %v1199 = vpop.f32.mrb[0].mxu0
    %1200 = vmatprep.mubr.bf16.mxu0 0
    %1201 = vmatmul.mubr.bf16.gmra.mrb[0].mxu0 %v1062
    %v1202 = vpop.f32.mrb[0].mxu0
    %v1203 = vadd.f32 0.0, %v1202
    %v1204 = vpop.f32.mrb[0].mxu0
    %v1205 = vpop.f32.mrb[0].mxu0
    %v1206 = vadd.f32 0.0, %v1205
    %v1207 = vpop.f32.mrb[0].mxu0
    %1208 = vmatprep.mubr.bf16.mxu0 0
    %1209 = vmatmul.mubr.bf16.gmra.mrb[0].mxu0 %v1063
    %v1210 = vpop.f32.mrb[0].mxu0
    %v1211 = vadd.f32 0.0, %v1210
    %v1212 = vpop.f32.mrb[0].mxu0
    %v1213 = vpop.f32.mrb[0].mxu0
    %v1214 = vadd.f32 0.0, %v1213
    %v1215 = vpop.f32.mrb[0].mxu0
    %1216 = vmatprep.mubr.bf16.mxu0 0
    %1217 = vmatmul.mubr.bf16.gmra.mrb[0].mxu0 %v1064
    %v1218 = vpop.f32.mrb[0].mxu0
    %v1219 = vadd.f32 0.0, %v1218
    %v1220 = vpop.f32.mrb[0].mxu0
    %v1221 = vpop.f32.mrb[0].mxu0
    %v1222 = vadd.f32 0.0, %v1221
    %v1223 = vpop.f32.mrb[0].mxu0
    %1224 = vmatprep.mubr.bf16.mxu0 0
    %1225 = vmatmul.mubr.bf16.gmra.mrb[0].mxu0 %v1065
    %v1226 = vpop.f32.mrb[0].mxu0
    %v1227 = vadd.f32 0.0, %v1226
    %v1228 = vpop.f32.mrb[0].mxu0
    %v1229 = vpop.f32.mrb[0].mxu0
    %v1230 = vadd.f32 0.0, %v1229
    %v1231 = vpop.f32.mrb[0].mxu0
    %1232 = vmatprep.mubr.bf16.mxu0 0
    %1233 = vmatmul.mubr.bf16.gmra.mrb[0].mxu0 %v1066
    %v1234 = vpop.f32.mrb[0].mxu0
    %v1235 = vadd.f32 0.0, %v1234
    %v1236 = vpop.f32.mrb[0].mxu0
    %v1237 = vpop.f32.mrb[0].mxu0
    %v1238 = vadd.f32 0.0, %v1237
    %v1239 = vpop.f32.mrb[0].mxu0
    %1240 = vmatprep.mubr.bf16.mxu0 0
    %1241 = vmatmul.mubr.bf16.gmra.mrb[0].mxu0 %v1067
    %v1242 = vpop.f32.mrb[0].mxu0
    %v1243 = vadd.f32 0.0, %v1242
    %v1244 = vpop.f32.mrb[0].mxu0
    %v1245 = vpop.f32.mrb[0].mxu0
    %v1246 = vadd.f32 0.0, %v1245
    %v1247 = vpop.f32.mrb[0].mxu0
    %1248 = vmatprep.mubr.bf16.mxu0 0
    %1249 = vmatmul.mubr.bf16.gmra.mrb[0].mxu0 %v1068
    %v1250 = vpop.f32.mrb[0].mxu0
    %v1251 = vadd.f32 0.0, %v1250
    %v1252 = vpop.f32.mrb[0].mxu0
    %v1253 = vpop.f32.mrb[0].mxu0
    %v1254 = vadd.f32 0.0, %v1253
    %v1255 = vpop.f32.mrb[0].mxu0
    %1256 = vmatprep.mubr.bf16.mxu0 0
    %1257 = vmatmul.mubr.bf16.gmra.mrb[0].mxu0 %v1069
    %v1258 = vpop.f32.mrb[0].mxu0
    %v1259 = vadd.f32 0.0, %v1258
    %v1260 = vpop.f32.mrb[0].mxu0
    %v1261 = vpop.f32.mrb[0].mxu0
    %v1262 = vadd.f32 0.0, %v1261
    %v1263 = vpop.f32.mrb[0].mxu0
    %1264 = vdwg.mxu0
    %v1265 = vpack.c.bf16 %v1126, %v1123
    %v1266 = vpack.c.bf16 %v1134, %v1131
    %v1267 = vpack.c.bf16 %v1142, %v1139
    %v1268 = vpack.c.bf16 %v1150, %v1147
    %v1269 = vpack.c.bf16 %v1158, %v1155
    %v1270 = vpack.c.bf16 %v1166, %v1163
    %v1271 = vpack.c.bf16 %v1174, %v1171
    %v1272 = vpack.c.bf16 %v1182, %v1179
    %v1273 = vpack.c.bf16 %v1190, %v1187
    %v1274 = vpack.c.bf16 %v1198, %v1195
    %v1275 = vpack.c.bf16 %v1206, %v1203
    %v1276 = vpack.c.bf16 %v1214, %v1211
    %v1277 = vpack.c.bf16 %v1222, %v1219
    %v1278 = vpack.c.bf16 %v1230, %v1227
    %v1279 = vpack.c.bf16 %v1238, %v1235
    %v1280 = vpack.c.bf16 %v1246, %v1243
    %v1281 = vpack.c.bf16 %v1254, %v1251
    %v1282 = vpack.c.bf16 %v1262, %v1259
    %v1288 = vunpack.c.l.b16 %v149
    %v1289 = vunpack.c.l.b16 %v150
    %v1290 = vunpack.c.l.b16 %v151
    %v1291 = vunpack.c.l.b16 %v152
    %v1292 = vunpack.c.l.b16 %v153
    %v1293 = vpack.c.b16 %v1289, %v1288
    %v1294 = vpack.c.b16 %v1291, %v1290
    %v1295 = vpack.c.b16 %v1292, %v1292
    %vm1298 = vcmask 326656
    %v1300 = vsel %vm1298, %v1265, 0
    %v1303 = vsel %vm1298, %v1266, 0
    %v1306 = vsel %vm1298, %v1267, 0
    %v1309 = vsel %vm1298, %v1268, 0
    %v1312 = vsel %vm1298, %v1269, 0
    %v1315 = vsel %vm1298, %v1270, 0
    %v1318 = vsel %vm1298, %v1271, 0
    %v1321 = vsel %vm1298, %v1272, 0
    %v1324 = vsel %vm1298, %v1273, 0
    %v1327 = vsel %vm1298, %v1274, 0
    %v1330 = vsel %vm1298, %v1275, 0
    %v1333 = vsel %vm1298, %v1276, 0
    %v1336 = vsel %vm1298, %v1277, 0
    %v1339 = vsel %vm1298, %v1278, 0
    %v1342 = vsel %vm1298, %v1279, 0
    %v1345 = vsel %vm1298, %v1280, 0
    %v1348 = vsel %vm1298, %v1281, 0
    %v1351 = vsel %vm1298, %v1282, 0
    %v1354 = vsel %vm368, %v1295, 0
    %1356 = vmatprep.subr.bf16.mxu0 0
    %1357 = vmatpush1.bf16.msra.mxu0 %v1293
    %1358 = vmatprep.subr.bf16.mxu0 0
    %1359 = vmatpush1.bf16.msra.mxu0 %v1294
    %1360 = vmatprep.subr.bf16.mxu0 0
    %1361 = vmatpush1.bf16.msra.mxu0 %v1354
    %1362 = vmatprep.subr.bf16.mxu0 0
    %1363 = vmatpush1.bf16.msra.mxu0 0
    %1364 = vmatprep.subr.bf16.mxu0 0
    %1365 = vmatpush1.bf16.msra.mxu0 0
    %1366 = vmatprep.subr.bf16.mxu0 0
    %1367 = vmatpush1.bf16.msra.mxu0 0
    %1368 = vmatprep.subr.bf16.mxu0 0
    %1369 = vmatpush1.bf16.msra.mxu0 0
    %1370 = vmatprep.subr.bf16.mxu0 0
    %1371 = vmatpush1.bf16.msra.mxu0 0
    %1372 = vmatprep.subr.bf16.mxu0 0
    %1373 = vmatpush1.bf16.msra.mxu0 0
    %1374 = vmatprep.subr.bf16.mxu0 0
    %1375 = vmatpush1.bf16.msra.mxu0 0
    %1376 = vmatprep.subr.bf16.mxu0 0
    %1377 = vmatpush1.bf16.msra.mxu0 0
    %1378 = vmatprep.subr.bf16.mxu0 0
    %1379 = vmatpush1.bf16.msra.mxu0 0
    %1380 = vmatprep.subr.bf16.mxu0 0
    %1381 = vmatpush1.bf16.msra.mxu0 0
    %1382 = vmatprep.subr.bf16.mxu0 0
    %1383 = vmatpush1.bf16.msra.mxu0 0
    %1384 = vmatprep.subr.bf16.mxu0 0
    %1385 = vmatpush1.bf16.msra.mxu0 0
    %1386 = vmatprep.subr.bf16.mxu0 0
    %1387 = vmatpush1.bf16.msra.mxu0 0
    %1388 = vmatprep.mubr.bf16.mxu0 0
    %1389 = vmatmul.mubr.bf16.gmra.mrb[0].mxu0 %v1300
    %v1390 = vpop.f32.mrb[0].mxu0
    %v1391 = vadd.f32 0.0, %v1390
    %v1392 = vpop.f32.mrb[0].mxu0
    %v1393 = vpop.f32.mrb[0].mxu0
    %v1394 = vadd.f32 0.0, %v1393
    %v1395 = vpop.f32.mrb[0].mxu0
    %1396 = vmatprep.mubr.bf16.mxu0 0
    %1397 = vmatmul.mubr.bf16.gmra.mrb[0].mxu0 %v1303
    %v1398 = vpop.f32.mrb[0].mxu0
    %v1399 = vadd.f32 0.0, %v1398
    %v1400 = vpop.f32.mrb[0].mxu0
    %v1401 = vpop.f32.mrb[0].mxu0
    %v1402 = vadd.f32 0.0, %v1401
    %v1403 = vpop.f32.mrb[0].mxu0
    %1404 = vmatprep.mubr.bf16.mxu0 0
    %1405 = vmatmul.mubr.bf16.gmra.mrb[0].mxu0 %v1306
    %v1406 = vpop.f32.mrb[0].mxu0
    %v1407 = vadd.f32 0.0, %v1406
    %v1408 = vpop.f32.mrb[0].mxu0
    %v1409 = vpop.f32.mrb[0].mxu0
    %v1410 = vadd.f32 0.0, %v1409
    %v1411 = vpop.f32.mrb[0].mxu0
    %1412 = vmatprep.mubr.bf16.mxu0 0
    %1413 = vmatmul.mubr.bf16.gmra.mrb[0].mxu0 %v1309
    %v1414 = vpop.f32.mrb[0].mxu0
    %v1415 = vadd.f32 0.0, %v1414
    %v1416 = vpop.f32.mrb[0].mxu0
    %v1417 = vpop.f32.mrb[0].mxu0
    %v1418 = vadd.f32 0.0, %v1417
    %v1419 = vpop.f32.mrb[0].mxu0
    %1420 = vmatprep.mubr.bf16.mxu0 0
    %1421 = vmatmul.mubr.bf16.gmra.mrb[0].mxu0 %v1312
    %v1422 = vpop.f32.mrb[0].mxu0
    %v1423 = vadd.f32 0.0, %v1422
    %v1424 = vpop.f32.mrb[0].mxu0
    %v1425 = vpop.f32.mrb[0].mxu0
    %v1426 = vadd.f32 0.0, %v1425
    %v1427 = vpop.f32.mrb[0].mxu0
    %1428 = vmatprep.mubr.bf16.mxu0 0
    %1429 = vmatmul.mubr.bf16.gmra.mrb[0].mxu0 %v1315
    %v1430 = vpop.f32.mrb[0].mxu0
    %v1431 = vadd.f32 0.0, %v1430
    %v1432 = vpop.f32.mrb[0].mxu0
    %v1433 = vpop.f32.mrb[0].mxu0
    %v1434 = vadd.f32 0.0, %v1433
    %v1435 = vpop.f32.mrb[0].mxu0
    %1436 = vmatprep.mubr.bf16.mxu0 0
    %1437 = vmatmul.mubr.bf16.gmra.mrb[0].mxu0 %v1318
    %v1438 = vpop.f32.mrb[0].mxu0
    %v1439 = vadd.f32 0.0, %v1438
    %v1440 = vpop.f32.mrb[0].mxu0
    %v1441 = vpop.f32.mrb[0].mxu0
    %v1442 = vadd.f32 0.0, %v1441
    %v1443 = vpop.f32.mrb[0].mxu0
    %1444 = vmatprep.mubr.bf16.mxu0 0
    %1445 = vmatmul.mubr.bf16.gmra.mrb[0].mxu0 %v1321
    %v1446 = vpop.f32.mrb[0].mxu0
    %v1447 = vadd.f32 0.0, %v1446
    %v1448 = vpop.f32.mrb[0].mxu0
    %v1449 = vpop.f32.mrb[0].mxu0
    %v1450 = vadd.f32 0.0, %v1449
    %v1451 = vpop.f32.mrb[0].mxu0
    %1452 = vmatprep.mubr.bf16.mxu0 0
    %1453 = vmatmul.mubr.bf16.gmra.mrb[0].mxu0 %v1324
    %v1454 = vpop.f32.mrb[0].mxu0
    %v1455 = vadd.f32 0.0, %v1454
    %v1456 = vpop.f32.mrb[0].mxu0
    %v1457 = vpop.f32.mrb[0].mxu0
    %v1458 = vadd.f32 0.0, %v1457
    %v1459 = vpop.f32.mrb[0].mxu0
    %1460 = vmatprep.mubr.bf16.mxu0 0
    %1461 = vmatmul.mubr.bf16.gmra.mrb[0].mxu0 %v1327
    %v1462 = vpop.f32.mrb[0].mxu0
    %v1463 = vadd.f32 0.0, %v1462
    %v1464 = vpop.f32.mrb[0].mxu0
    %v1465 = vpop.f32.mrb[0].mxu0
    %v1466 = vadd.f32 0.0, %v1465
    %v1467 = vpop.f32.mrb[0].mxu0
    %1468 = vmatprep.mubr.bf16.mxu0 0
    %1469 = vmatmul.mubr.bf16.gmra.mrb[0].mxu0 %v1330
    %v1470 = vpop.f32.mrb[0].mxu0
    %v1471 = vadd.f32 0.0, %v1470
    %v1472 = vpop.f32.mrb[0].mxu0
    %v1473 = vpop.f32.mrb[0].mxu0
    %v1474 = vadd.f32 0.0, %v1473
    %v1475 = vpop.f32.mrb[0].mxu0
    %1476 = vmatprep.mubr.bf16.mxu0 0
    %1477 = vmatmul.mubr.bf16.gmra.mrb[0].mxu0 %v1333
    %v1478 = vpop.f32.mrb[0].mxu0
    %v1479 = vadd.f32 0.0, %v1478
    %v1480 = vpop.f32.mrb[0].mxu0
    %v1481 = vpop.f32.mrb[0].mxu0
    %v1482 = vadd.f32 0.0, %v1481
    %v1483 = vpop.f32.mrb[0].mxu0
    %1484 = vmatprep.mubr.bf16.mxu0 0
    %1485 = vmatmul.mubr.bf16.gmra.mrb[0].mxu0 %v1336
    %v1486 = vpop.f32.mrb[0].mxu0
    %v1487 = vadd.f32 0.0, %v1486
    %v1488 = vpop.f32.mrb[0].mxu0
    %v1489 = vpop.f32.mrb[0].mxu0
    %v1490 = vadd.f32 0.0, %v1489
    %v1491 = vpop.f32.mrb[0].mxu0
    %1492 = vmatprep.mubr.bf16.mxu0 0
    %1493 = vmatmul.mubr.bf16.gmra.mrb[0].mxu0 %v1339
    %v1494 = vpop.f32.mrb[0].mxu0
    %v1495 = vadd.f32 0.0, %v1494
    %v1496 = vpop.f32.mrb[0].mxu0
    %v1497 = vpop.f32.mrb[0].mxu0
    %v1498 = vadd.f32 0.0, %v1497
    %v1499 = vpop.f32.mrb[0].mxu0
    %1500 = vmatprep.mubr.bf16.mxu0 0
    %1501 = vmatmul.mubr.bf16.gmra.mrb[0].mxu0 %v1342
    %v1502 = vpop.f32.mrb[0].mxu0
    %v1503 = vadd.f32 0.0, %v1502
    %v1504 = vpop.f32.mrb[0].mxu0
    %v1505 = vpop.f32.mrb[0].mxu0
    %v1506 = vadd.f32 0.0, %v1505
    %v1507 = vpop.f32.mrb[0].mxu0
    %1508 = vmatprep.mubr.bf16.mxu0 0
    %1509 = vmatmul.mubr.bf16.gmra.mrb[0].mxu0 %v1345
    %v1510 = vpop.f32.mrb[0].mxu0
    %v1511 = vadd.f32 0.0, %v1510
    %v1512 = vpop.f32.mrb[0].mxu0
    %v1513 = vpop.f32.mrb[0].mxu0
    %v1514 = vadd.f32 0.0, %v1513
    %v1515 = vpop.f32.mrb[0].mxu0
    %1516 = vmatprep.mubr.bf16.mxu0 0
    %1517 = vmatmul.mubr.bf16.gmra.mrb[0].mxu0 %v1348
    %v1518 = vpop.f32.mrb[0].mxu0
    %v1519 = vadd.f32 0.0, %v1518
    %v1520 = vpop.f32.mrb[0].mxu0
    %v1521 = vpop.f32.mrb[0].mxu0
    %v1522 = vadd.f32 0.0, %v1521
    %v1523 = vpop.f32.mrb[0].mxu0
    %1524 = vmatprep.mubr.bf16.mxu0 0
    %1525 = vmatmul.mubr.bf16.gmra.mrb[0].mxu0 %v1351
    %v1526 = vpop.f32.mrb[0].mxu0
    %v1527 = vadd.f32 0.0, %v1526
    %v1528 = vpop.f32.mrb[0].mxu0
    %v1529 = vpop.f32.mrb[0].mxu0
    %v1530 = vadd.f32 0.0, %v1529
    %v1531 = vpop.f32.mrb[0].mxu0
    %1532 = vdwg.mxu0
    %v1533 = vmax.f32 %v1391, 0.0
    %v1534 = vmax.f32 %v1394, 0.0
    %v1535 = vmax.f32 %v1399, 0.0
    %v1536 = vmax.f32 %v1402, 0.0
    %v1537 = vmax.f32 %v1407, 0.0
    %v1538 = vmax.f32 %v1410, 0.0
    %v1539 = vmax.f32 %v1415, 0.0
    %v1540 = vmax.f32 %v1418, 0.0
    %v1541 = vmax.f32 %v1423, 0.0
    %v1542 = vmax.f32 %v1426, 0.0
    %v1543 = vmax.f32 %v1431, 0.0
    %v1544 = vmax.f32 %v1434, 0.0
    %v1545 = vmax.f32 %v1439, 0.0
    %v1546 = vmax.f32 %v1442, 0.0
    %v1547 = vmax.f32 %v1447, 0.0
    %v1548 = vmax.f32 %v1450, 0.0
    %v1549 = vmax.f32 %v1455, 0.0
    %v1550 = vmax.f32 %v1458, 0.0
    %v1551 = vmax.f32 %v1463, 0.0
    %v1552 = vmax.f32 %v1466, 0.0
    %v1553 = vmax.f32 %v1471, 0.0
    %v1554 = vmax.f32 %v1474, 0.0
    %v1555 = vmax.f32 %v1479, 0.0
    %v1556 = vmax.f32 %v1482, 0.0
    %v1557 = vmax.f32 %v1487, 0.0
    %v1558 = vmax.f32 %v1490, 0.0
    %v1559 = vmax.f32 %v1495, 0.0
    %v1560 = vmax.f32 %v1498, 0.0
    %v1561 = vmax.f32 %v1503, 0.0
    %v1562 = vmax.f32 %v1506, 0.0
    %v1563 = vmax.f32 %v1511, 0.0
    %v1564 = vmax.f32 %v1514, 0.0
    %v1565 = vmax.f32 %v1519, 0.0
    %v1566 = vmax.f32 %v1522, 0.0
    %v1567 = vmax.f32 %v1527, 0.0
    %v1568 = vmax.f32 %v1530, 0.0
    %v1569 = vpack.c.bf16 %v1534, %v1533
    %v1570 = vpack.c.bf16 %v1536, %v1535
    %v1571 = vpack.c.bf16 %v1538, %v1537
    %v1572 = vpack.c.bf16 %v1540, %v1539
    %v1573 = vpack.c.bf16 %v1542, %v1541
    %v1574 = vpack.c.bf16 %v1544, %v1543
    %v1575 = vpack.c.bf16 %v1546, %v1545
    %v1576 = vpack.c.bf16 %v1548, %v1547
    %v1577 = vpack.c.bf16 %v1550, %v1549
    %v1578 = vpack.c.bf16 %v1552, %v1551
    %v1579 = vpack.c.bf16 %v1554, %v1553
    %v1580 = vpack.c.bf16 %v1556, %v1555
    %v1581 = vpack.c.bf16 %v1558, %v1557
    %v1582 = vpack.c.bf16 %v1560, %v1559
    %v1583 = vpack.c.bf16 %v1562, %v1561
    %v1584 = vpack.c.bf16 %v1564, %v1563
    %v1585 = vpack.c.bf16 %v1566, %v1565
    %v1586 = vpack.c.bf16 %v1568, %v1567
    %v1589 = vunpack.c.l.b16 %v156
    %v1590 = vunpack.c.l.b16 %v157
    %v1591 = vpack.c.b16 %v1590, %v1589
    %vm1593 = vcmask 130048
    %v1595 = vsel %vm1593, %v1571, 0
    %v1598 = vsel %vm1593, %v1572, 0
    %1600 = vmatprep.subr.bf16.mxu0 0
    %1601 = vmatpush1.bf16.msra.mxu0 %v1591
    %1602 = vmatprep.subr.bf16.mxu0 0
    %1603 = vmatpush1.bf16.msra.mxu0 0
    %1604 = vmatprep.subr.bf16.mxu0 0
    %1605 = vmatpush1.bf16.msra.mxu0 0
    %1606 = vmatprep.subr.bf16.mxu0 0
    %1607 = vmatpush1.bf16.msra.mxu0 0
    %1608 = vmatprep.subr.bf16.mxu0 0
    %1609 = vmatpush1.bf16.msra.mxu0 0
    %1610 = vmatprep.subr.bf16.mxu0 0
    %1611 = vmatpush1.bf16.msra.mxu0 0
    %1612 = vmatprep.subr.bf16.mxu0 0
    %1613 = vmatpush1.bf16.msra.mxu0 0
    %1614 = vmatprep.subr.bf16.mxu0 0
    %1615 = vmatpush1.bf16.msra.mxu0 0
    %1616 = vmatprep.subr.bf16.mxu0 0
    %1617 = vmatpush1.bf16.msra.mxu0 0
    %1618 = vmatprep.subr.bf16.mxu0 0
    %1619 = vmatpush1.bf16.msra.mxu0 0
    %1620 = vmatprep.subr.bf16.mxu0 0
    %1621 = vmatpush1.bf16.msra.mxu0 0
    %1622 = vmatprep.subr.bf16.mxu0 0
    %1623 = vmatpush1.bf16.msra.mxu0 0
    %1624 = vmatprep.subr.bf16.mxu0 0
    %1625 = vmatpush1.bf16.msra.mxu0 0
    %1626 = vmatprep.subr.bf16.mxu0 0
    %1627 = vmatpush1.bf16.msra.mxu0 0
    %1628 = vmatprep.subr.bf16.mxu0 0
    %1629 = vmatpush1.bf16.msra.mxu0 0
    %1630 = vmatprep.subr.bf16.mxu0 0
    %1631 = vmatpush1.bf16.msra.mxu0 0
    %1632 = vmatprep.mubr.bf16.mxu0 0
    %1633 = vmatmul.mubr.bf16.gmra.mrb[0].mxu0 %v1595
    %v1634 = vpop.f32.mrb[0].mxu0
    %v1635 = vadd.f32 0.0, %v1634
    %v1636 = vpop.f32.mrb[0].mxu0
    %v1637 = vpop.f32.mrb[0].mxu0
    %v1638 = vadd.f32 0.0, %v1637
    %v1639 = vpop.f32.mrb[0].mxu0
    %1640 = vmatprep.mubr.bf16.mxu0 0
    %1641 = vmatmul.mubr.bf16.gmra.mrb[0].mxu0 %v1598
    %v1642 = vpop.f32.mrb[0].mxu0
    %v1643 = vadd.f32 0.0, %v1642
    %v1644 = vpop.f32.mrb[0].mxu0
    %v1645 = vpop.f32.mrb[0].mxu0
    %v1646 = vadd.f32 0.0, %v1645
    %v1647 = vpop.f32.mrb[0].mxu0
    %1648 = vdwg.mxu0
    %v1651 = vunpack.c.l.b16 %v154
    %v1652 = vunpack.c.l.b16 %v155
    %v1653 = vpack.c.b16 %v1652, %v1651
    %v1656 = vsel %vm1593, %v1569, 0
    %v1659 = vsel %vm1593, %v1570, 0
    %1661 = vmatprep.subr.bf16.mxu0 0
    %1662 = vmatpush1.bf16.msra.mxu0 %v1653
    %1663 = vmatprep.subr.bf16.mxu0 0
    %1664 = vmatpush1.bf16.msra.mxu0 0
    %1665 = vmatprep.subr.bf16.mxu0 0
    %1666 = vmatpush1.bf16.msra.mxu0 0
    %1667 = vmatprep.subr.bf16.mxu0 0
    %1668 = vmatpush1.bf16.msra.mxu0 0
    %1669 = vmatprep.subr.bf16.mxu0 0
    %1670 = vmatpush1.bf16.msra.mxu0 0
    %1671 = vmatprep.subr.bf16.mxu0 0
    %1672 = vmatpush1.bf16.msra.mxu0 0
    %1673 = vmatprep.subr.bf16.mxu0 0
    %1674 = vmatpush1.bf16.msra.mxu0 0
    %1675 = vmatprep.subr.bf16.mxu0 0
    %1676 = vmatpush1.bf16.msra.mxu0 0
    %1677 = vmatprep.subr.bf16.mxu0 0
    %1678 = vmatpush1.bf16.msra.mxu0 0
    %1679 = vmatprep.subr.bf16.mxu0 0
    %1680 = vmatpush1.bf16.msra.mxu0 0
    %1681 = vmatprep.subr.bf16.mxu0 0
    %1682 = vmatpush1.bf16.msra.mxu0 0
    %1683 = vmatprep.subr.bf16.mxu0 0
    %1684 = vmatpush1.bf16.msra.mxu0 0
    %1685 = vmatprep.subr.bf16.mxu0 0
    %1686 = vmatpush1.bf16.msra.mxu0 0
    %1687 = vmatprep.subr.bf16.mxu0 0
    %1688 = vmatpush1.bf16.msra.mxu0 0
    %1689 = vmatprep.subr.bf16.mxu0 0
    %1690 = vmatpush1.bf16.msra.mxu0 0
    %1691 = vmatprep.subr.bf16.mxu0 0
    %1692 = vmatpush1.bf16.msra.mxu0 0
    %1693 = vmatprep.mubr.bf16.mxu0 0
    %1694 = vmatmul.mubr.bf16.gmra.mrb[0].mxu0 %v1656
    %v1695 = vpop.f32.mrb[0].mxu0
    %v1696 = vadd.f32 %v1635, %v1695
    %v1697 = vpop.f32.mrb[0].mxu0
    %v1698 = vpop.f32.mrb[0].mxu0
    %v1699 = vadd.f32 %v1638, %v1698
    %v1700 = vpop.f32.mrb[0].mxu0
    %1701 = vmatprep.mubr.bf16.mxu0 0
    %1702 = vmatmul.mubr.bf16.gmra.mrb[0].mxu0 %v1659
    %v1703 = vpop.f32.mrb[0].mxu0
    %v1704 = vadd.f32 %v1643, %v1703
    %v1705 = vpop.f32.mrb[0].mxu0
    %v1706 = vpop.f32.mrb[0].mxu0
    %v1707 = vadd.f32 %v1646, %v1706
    %v1708 = vpop.f32.mrb[0].mxu0
    %1709 = vdwg.mxu0
    %v1712 = vunpack.c.l.b16 %v158
    %v1713 = vunpack.c.l.b16 %v159
    %v1714 = vpack.c.b16 %v1713, %v1712
    %v1717 = vsel %vm1593, %v1573, 0
    %v1720 = vsel %vm1593, %v1574, 0
    %1722 = vmatprep.subr.bf16.mxu0 0
    %1723 = vmatpush1.bf16.msra.mxu0 %v1714
    %1724 = vmatprep.subr.bf16.mxu0 0
    %1725 = vmatpush1.bf16.msra.mxu0 0
    %1726 = vmatprep.subr.bf16.mxu0 0
    %1727 = vmatpush1.bf16.msra.mxu0 0
    %1728 = vmatprep.subr.bf16.mxu0 0
    %1729 = vmatpush1.bf16.msra.mxu0 0
    %1730 = vmatprep.subr.bf16.mxu0 0
    %1731 = vmatpush1.bf16.msra.mxu0 0
    %1732 = vmatprep.subr.bf16.mxu0 0
    %1733 = vmatpush1.bf16.msra.mxu0 0
    %1734 = vmatprep.subr.bf16.mxu0 0
    %1735 = vmatpush1.bf16.msra.mxu0 0
    %1736 = vmatprep.subr.bf16.mxu0 0
    %1737 = vmatpush1.bf16.msra.mxu0 0
    %1738 = vmatprep.subr.bf16.mxu0 0
    %1739 = vmatpush1.bf16.msra.mxu0 0
    %1740 = vmatprep.subr.bf16.mxu0 0
    %1741 = vmatpush1.bf16.msra.mxu0 0
    %1742 = vmatprep.subr.bf16.mxu0 0
    %1743 = vmatpush1.bf16.msra.mxu0 0
    %1744 = vmatprep.subr.bf16.mxu0 0
    %1745 = vmatpush1.bf16.msra.mxu0 0
    %1746 = vmatprep.subr.bf16.mxu0 0
    %1747 = vmatpush1.bf16.msra.mxu0 0
    %1748 = vmatprep.subr.bf16.mxu0 0
    %1749 = vmatpush1.bf16.msra.mxu0 0
    %1750 = vmatprep.subr.bf16.mxu0 0
    %1751 = vmatpush1.bf16.msra.mxu0 0
    %1752 = vmatprep.subr.bf16.mxu0 0
    %1753 = vmatpush1.bf16.msra.mxu0 0
    %1754 = vmatprep.mubr.bf16.mxu0 0
    %1755 = vmatmul.mubr.bf16.gmra.mrb[0].mxu0 %v1717
    %v1756 = vpop.f32.mrb[0].mxu0
    %v1757 = vadd.f32 0.0, %v1756
    %v1758 = vpop.f32.mrb[0].mxu0
    %v1759 = vpop.f32.mrb[0].mxu0
    %v1760 = vadd.f32 0.0, %v1759
    %v1761 = vpop.f32.mrb[0].mxu0
    %1762 = vmatprep.mubr.bf16.mxu0 0
    %1763 = vmatmul.mubr.bf16.gmra.mrb[0].mxu0 %v1720
    %v1764 = vpop.f32.mrb[0].mxu0
    %v1765 = vadd.f32 0.0, %v1764
    %v1766 = vpop.f32.mrb[0].mxu0
    %v1767 = vpop.f32.mrb[0].mxu0
    %v1768 = vadd.f32 0.0, %v1767
    %v1769 = vpop.f32.mrb[0].mxu0
    %1770 = vdwg.mxu0
    %v1771 = vadd.f32 %v1696, %v1757
    %v1772 = vadd.f32 %v1699, %v1760
    %v1773 = vadd.f32 %v1704, %v1765
    %v1774 = vadd.f32 %v1707, %v1768
    %v1777 = vunpack.c.l.b16 %v160
    %v1778 = vunpack.c.l.b16 %v161
    %v1779 = vpack.c.b16 %v1778, %v1777
    %v1782 = vsel %vm1593, %v1575, 0
    %v1785 = vsel %vm1593, %v1576, 0
    %1787 = vmatprep.subr.bf16.mxu0 0
    %1788 = vmatpush1.bf16.msra.mxu0 %v1779
    %1789 = vmatprep.subr.bf16.mxu0 0
    %1790 = vmatpush1.bf16.msra.mxu0 0
    %1791 = vmatprep.subr.bf16.mxu0 0
    %1792 = vmatpush1.bf16.msra.mxu0 0
    %1793 = vmatprep.subr.bf16.mxu0 0
    %1794 = vmatpush1.bf16.msra.mxu0 0
    %1795 = vmatprep.subr.bf16.mxu0 0
    %1796 = vmatpush1.bf16.msra.mxu0 0
    %1797 = vmatprep.subr.bf16.mxu0 0
    %1798 = vmatpush1.bf16.msra.mxu0 0
    %1799 = vmatprep.subr.bf16.mxu0 0
    %1800 = vmatpush1.bf16.msra.mxu0 0
    %1801 = vmatprep.subr.bf16.mxu0 0
    %1802 = vmatpush1.bf16.msra.mxu0 0
    %1803 = vmatprep.subr.bf16.mxu0 0
    %1804 = vmatpush1.bf16.msra.mxu0 0
    %1805 = vmatprep.subr.bf16.mxu0 0
    %1806 = vmatpush1.bf16.msra.mxu0 0
    %1807 = vmatprep.subr.bf16.mxu0 0
    %1808 = vmatpush1.bf16.msra.mxu0 0
    %1809 = vmatprep.subr.bf16.mxu0 0
    %1810 = vmatpush1.bf16.msra.mxu0 0
    %1811 = vmatprep.subr.bf16.mxu0 0
    %1812 = vmatpush1.bf16.msra.mxu0 0
    %1813 = vmatprep.subr.bf16.mxu0 0
    %1814 = vmatpush1.bf16.msra.mxu0 0
    %1815 = vmatprep.subr.bf16.mxu0 0
    %1816 = vmatpush1.bf16.msra.mxu0 0
    %1817 = vmatprep.subr.bf16.mxu0 0
    %1818 = vmatpush1.bf16.msra.mxu0 0
    %1819 = vmatprep.mubr.bf16.mxu0 0
    %1820 = vmatmul.mubr.bf16.gmra.mrb[0].mxu0 %v1782
    %v1821 = vpop.f32.mrb[0].mxu0
    %v1822 = vadd.f32 0.0, %v1821
    %v1823 = vpop.f32.mrb[0].mxu0
    %v1824 = vpop.f32.mrb[0].mxu0
    %v1825 = vadd.f32 0.0, %v1824
    %v1826 = vpop.f32.mrb[0].mxu0
    %1827 = vmatprep.mubr.bf16.mxu0 0
    %1828 = vmatmul.mubr.bf16.gmra.mrb[0].mxu0 %v1785
    %v1829 = vpop.f32.mrb[0].mxu0
    %v1830 = vadd.f32 0.0, %v1829
    %v1831 = vpop.f32.mrb[0].mxu0
    %v1832 = vpop.f32.mrb[0].mxu0
    %v1833 = vadd.f32 0.0, %v1832
    %v1834 = vpop.f32.mrb[0].mxu0
    %1835 = vdwg.mxu0
    %v1836 = vadd.f32 %v1771, %v1822
    %v1837 = vadd.f32 %v1772, %v1825
    %v1838 = vadd.f32 %v1773, %v1830
    %v1839 = vadd.f32 %v1774, %v1833
    %v1842 = vunpack.c.l.b16 %v162
    %v1843 = vunpack.c.l.b16 %v163
    %v1844 = vpack.c.b16 %v1843, %v1842
    %v1847 = vsel %vm1593, %v1577, 0
    %v1850 = vsel %vm1593, %v1578, 0
    %1852 = vmatprep.subr.bf16.mxu0 0
    %1853 = vmatpush1.bf16.msra.mxu0 %v1844
    %1854 = vmatprep.subr.bf16.mxu0 0
    %1855 = vmatpush1.bf16.msra.mxu0 0
    %1856 = vmatprep.subr.bf16.mxu0 0
    %1857 = vmatpush1.bf16.msra.mxu0 0
    %1858 = vmatprep.subr.bf16.mxu0 0
    %1859 = vmatpush1.bf16.msra.mxu0 0
    %1860 = vmatprep.subr.bf16.mxu0 0
    %1861 = vmatpush1.bf16.msra.mxu0 0
    %1862 = vmatprep.subr.bf16.mxu0 0
    %1863 = vmatpush1.bf16.msra.mxu0 0
    %1864 = vmatprep.subr.bf16.mxu0 0
    %1865 = vmatpush1.bf16.msra.mxu0 0
    %1866 = vmatprep.subr.bf16.mxu0 0
    %1867 = vmatpush1.bf16.msra.mxu0 0
    %1868 = vmatprep.subr.bf16.mxu0 0
    %1869 = vmatpush1.bf16.msra.mxu0 0
    %1870 = vmatprep.subr.bf16.mxu0 0
    %1871 = vmatpush1.bf16.msra.mxu0 0
    %1872 = vmatprep.subr.bf16.mxu0 0
    %1873 = vmatpush1.bf16.msra.mxu0 0
    %1874 = vmatprep.subr.bf16.mxu0 0
    %1875 = vmatpush1.bf16.msra.mxu0 0
    %1876 = vmatprep.subr.bf16.mxu0 0
    %1877 = vmatpush1.bf16.msra.mxu0 0
    %1878 = vmatprep.subr.bf16.mxu0 0
    %1879 = vmatpush1.bf16.msra.mxu0 0
    %1880 = vmatprep.subr.bf16.mxu0 0
    %1881 = vmatpush1.bf16.msra.mxu0 0
    %1882 = vmatprep.subr.bf16.mxu0 0
    %1883 = vmatpush1.bf16.msra.mxu0 0
    %1884 = vmatprep.mubr.bf16.mxu0 0
    %1885 = vmatmul.mubr.bf16.gmra.mrb[0].mxu0 %v1847
    %v1886 = vpop.f32.mrb[0].mxu0
    %v1887 = vadd.f32 0.0, %v1886
    %v1888 = vpop.f32.mrb[0].mxu0
    %v1889 = vpop.f32.mrb[0].mxu0
    %v1890 = vadd.f32 0.0, %v1889
    %v1891 = vpop.f32.mrb[0].mxu0
    %1892 = vmatprep.mubr.bf16.mxu0 0
    %1893 = vmatmul.mubr.bf16.gmra.mrb[0].mxu0 %v1850
    %v1894 = vpop.f32.mrb[0].mxu0
    %v1895 = vadd.f32 0.0, %v1894
    %v1896 = vpop.f32.mrb[0].mxu0
    %v1897 = vpop.f32.mrb[0].mxu0
    %v1898 = vadd.f32 0.0, %v1897
    %v1899 = vpop.f32.mrb[0].mxu0
    %1900 = vdwg.mxu0
    %v1901 = vadd.f32 %v1836, %v1887
    %v1902 = vadd.f32 %v1837, %v1890
    %v1903 = vadd.f32 %v1838, %v1895
    %v1904 = vadd.f32 %v1839, %v1898
    %v1907 = vunpack.c.l.b16 %v164
    %v1908 = vunpack.c.l.b16 %v165
    %v1909 = vpack.c.b16 %v1908, %v1907
    %v1912 = vsel %vm1593, %v1579, 0
    %v1915 = vsel %vm1593, %v1580, 0
    %1917 = vmatprep.subr.bf16.mxu0 0
    %1918 = vmatpush1.bf16.msra.mxu0 %v1909
    %1919 = vmatprep.subr.bf16.mxu0 0
    %1920 = vmatpush1.bf16.msra.mxu0 0
    %1921 = vmatprep.subr.bf16.mxu0 0
    %1922 = vmatpush1.bf16.msra.mxu0 0
    %1923 = vmatprep.subr.bf16.mxu0 0
    %1924 = vmatpush1.bf16.msra.mxu0 0
    %1925 = vmatprep.subr.bf16.mxu0 0
    %1926 = vmatpush1.bf16.msra.mxu0 0
    %1927 = vmatprep.subr.bf16.mxu0 0
    %1928 = vmatpush1.bf16.msra.mxu0 0
    %1929 = vmatprep.subr.bf16.mxu0 0
    %1930 = vmatpush1.bf16.msra.mxu0 0
    %1931 = vmatprep.subr.bf16.mxu0 0
    %1932 = vmatpush1.bf16.msra.mxu0 0
    %1933 = vmatprep.subr.bf16.mxu0 0
    %1934 = vmatpush1.bf16.msra.mxu0 0
    %1935 = vmatprep.subr.bf16.mxu0 0
    %1936 = vmatpush1.bf16.msra.mxu0 0
    %1937 = vmatprep.subr.bf16.mxu0 0
    %1938 = vmatpush1.bf16.msra.mxu0 0
    %1939 = vmatprep.subr.bf16.mxu0 0
    %1940 = vmatpush1.bf16.msra.mxu0 0
    %1941 = vmatprep.subr.bf16.mxu0 0
    %1942 = vmatpush1.bf16.msra.mxu0 0
    %1943 = vmatprep.subr.bf16.mxu0 0
    %1944 = vmatpush1.bf16.msra.mxu0 0
    %1945 = vmatprep.subr.bf16.mxu0 0
    %1946 = vmatpush1.bf16.msra.mxu0 0
    %1947 = vmatprep.subr.bf16.mxu0 0
    %1948 = vmatpush1.bf16.msra.mxu0 0
    %1949 = vmatprep.mubr.bf16.mxu0 0
    %1950 = vmatmul.mubr.bf16.gmra.mrb[0].mxu0 %v1912
    %v1951 = vpop.f32.mrb[0].mxu0
    %v1952 = vadd.f32 0.0, %v1951
    %v1953 = vpop.f32.mrb[0].mxu0
    %v1954 = vpop.f32.mrb[0].mxu0
    %v1955 = vadd.f32 0.0, %v1954
    %v1956 = vpop.f32.mrb[0].mxu0
    %1957 = vmatprep.mubr.bf16.mxu0 0
    %1958 = vmatmul.mubr.bf16.gmra.mrb[0].mxu0 %v1915
    %v1959 = vpop.f32.mrb[0].mxu0
    %v1960 = vadd.f32 0.0, %v1959
    %v1961 = vpop.f32.mrb[0].mxu0
    %v1962 = vpop.f32.mrb[0].mxu0
    %v1963 = vadd.f32 0.0, %v1962
    %v1964 = vpop.f32.mrb[0].mxu0
    %1965 = vdwg.mxu0
    %v1966 = vadd.f32 %v1901, %v1952
    %v1967 = vadd.f32 %v1902, %v1955
    %v1968 = vadd.f32 %v1903, %v1960
    %v1969 = vadd.f32 %v1904, %v1963
    %v1972 = vunpack.c.l.b16 %v166
    %v1973 = vunpack.c.l.b16 %v167
    %v1974 = vpack.c.b16 %v1973, %v1972
    %v1977 = vsel %vm1593, %v1581, 0
    %v1980 = vsel %vm1593, %v1582, 0
    %1982 = vmatprep.subr.bf16.mxu0 0
    %1983 = vmatpush1.bf16.msra.mxu0 %v1974
    %1984 = vmatprep.subr.bf16.mxu0 0
    %1985 = vmatpush1.bf16.msra.mxu0 0
    %1986 = vmatprep.subr.bf16.mxu0 0
    %1987 = vmatpush1.bf16.msra.mxu0 0
    %1988 = vmatprep.subr.bf16.mxu0 0
    %1989 = vmatpush1.bf16.msra.mxu0 0
    %1990 = vmatprep.subr.bf16.mxu0 0
    %1991 = vmatpush1.bf16.msra.mxu0 0
    %1992 = vmatprep.subr.bf16.mxu0 0
    %1993 = vmatpush1.bf16.msra.mxu0 0
    %1994 = vmatprep.subr.bf16.mxu0 0
    %1995 = vmatpush1.bf16.msra.mxu0 0
    %1996 = vmatprep.subr.bf16.mxu0 0
    %1997 = vmatpush1.bf16.msra.mxu0 0
    %1998 = vmatprep.subr.bf16.mxu0 0
    %1999 = vmatpush1.bf16.msra.mxu0 0
    %2000 = vmatprep.subr.bf16.mxu0 0
    %2001 = vmatpush1.bf16.msra.mxu0 0
    %2002 = vmatprep.subr.bf16.mxu0 0
    %2003 = vmatpush1.bf16.msra.mxu0 0
    %2004 = vmatprep.subr.bf16.mxu0 0
    %2005 = vmatpush1.bf16.msra.mxu0 0
    %2006 = vmatprep.subr.bf16.mxu0 0
    %2007 = vmatpush1.bf16.msra.mxu0 0
    %2008 = vmatprep.subr.bf16.mxu0 0
    %2009 = vmatpush1.bf16.msra.mxu0 0
    %2010 = vmatprep.subr.bf16.mxu0 0
    %2011 = vmatpush1.bf16.msra.mxu0 0
    %2012 = vmatprep.subr.bf16.mxu0 0
    %2013 = vmatpush1.bf16.msra.mxu0 0
    %2014 = vmatprep.mubr.bf16.mxu0 0
    %2015 = vmatmul.mubr.bf16.gmra.mrb[0].mxu0 %v1977
    %v2016 = vpop.f32.mrb[0].mxu0
    %v2017 = vadd.f32 0.0, %v2016
    %v2018 = vpop.f32.mrb[0].mxu0
    %v2019 = vpop.f32.mrb[0].mxu0
    %v2020 = vadd.f32 0.0, %v2019
    %v2021 = vpop.f32.mrb[0].mxu0
    %2022 = vmatprep.mubr.bf16.mxu0 0
    %2023 = vmatmul.mubr.bf16.gmra.mrb[0].mxu0 %v1980
    %v2024 = vpop.f32.mrb[0].mxu0
    %v2025 = vadd.f32 0.0, %v2024
    %v2026 = vpop.f32.mrb[0].mxu0
    %v2027 = vpop.f32.mrb[0].mxu0
    %v2028 = vadd.f32 0.0, %v2027
    %v2029 = vpop.f32.mrb[0].mxu0
    %2030 = vdwg.mxu0
    %v2031 = vadd.f32 %v1966, %v2017
    %v2032 = vadd.f32 %v1967, %v2020
    %v2033 = vadd.f32 %v1968, %v2025
    %v2034 = vadd.f32 %v1969, %v2028
    %v2037 = vunpack.c.l.b16 %v168
    %v2038 = vunpack.c.l.b16 %v169
    %v2039 = vpack.c.b16 %v2038, %v2037
    %v2042 = vsel %vm1593, %v1583, 0
    %v2045 = vsel %vm1593, %v1584, 0
    %2047 = vmatprep.subr.bf16.mxu0 0
    %2048 = vmatpush1.bf16.msra.mxu0 %v2039
    %2049 = vmatprep.subr.bf16.mxu0 0
    %2050 = vmatpush1.bf16.msra.mxu0 0
    %2051 = vmatprep.subr.bf16.mxu0 0
    %2052 = vmatpush1.bf16.msra.mxu0 0
    %2053 = vmatprep.subr.bf16.mxu0 0
    %2054 = vmatpush1.bf16.msra.mxu0 0
    %2055 = vmatprep.subr.bf16.mxu0 0
    %2056 = vmatpush1.bf16.msra.mxu0 0
    %2057 = vmatprep.subr.bf16.mxu0 0
    %2058 = vmatpush1.bf16.msra.mxu0 0
    %2059 = vmatprep.subr.bf16.mxu0 0
    %2060 = vmatpush1.bf16.msra.mxu0 0
    %2061 = vmatprep.subr.bf16.mxu0 0
    %2062 = vmatpush1.bf16.msra.mxu0 0
    %2063 = vmatprep.subr.bf16.mxu0 0
    %2064 = vmatpush1.bf16.msra.mxu0 0
    %2065 = vmatprep.subr.bf16.mxu0 0
    %2066 = vmatpush1.bf16.msra.mxu0 0
    %2067 = vmatprep.subr.bf16.mxu0 0
    %2068 = vmatpush1.bf16.msra.mxu0 0
    %2069 = vmatprep.subr.bf16.mxu0 0
    %2070 = vmatpush1.bf16.msra.mxu0 0
    %2071 = vmatprep.subr.bf16.mxu0 0
    %2072 = vmatpush1.bf16.msra.mxu0 0
    %2073 = vmatprep.subr.bf16.mxu0 0
    %2074 = vmatpush1.bf16.msra.mxu0 0
    %2075 = vmatprep.subr.bf16.mxu0 0
    %2076 = vmatpush1.bf16.msra.mxu0 0
    %2077 = vmatprep.subr.bf16.mxu0 0
    %2078 = vmatpush1.bf16.msra.mxu0 0
    %2079 = vmatprep.mubr.bf16.mxu0 0
    %2080 = vmatmul.mubr.bf16.gmra.mrb[0].mxu0 %v2042
    %v2081 = vpop.f32.mrb[0].mxu0
    %v2082 = vadd.f32 0.0, %v2081
    %v2083 = vpop.f32.mrb[0].mxu0
    %v2084 = vpop.f32.mrb[0].mxu0
    %v2085 = vadd.f32 0.0, %v2084
    %v2086 = vpop.f32.mrb[0].mxu0
    %2087 = vmatprep.mubr.bf16.mxu0 0
    %2088 = vmatmul.mubr.bf16.gmra.mrb[0].mxu0 %v2045
    %v2089 = vpop.f32.mrb[0].mxu0
    %v2090 = vadd.f32 0.0, %v2089
    %v2091 = vpop.f32.mrb[0].mxu0
    %v2092 = vpop.f32.mrb[0].mxu0
    %v2093 = vadd.f32 0.0, %v2092
    %v2094 = vpop.f32.mrb[0].mxu0
    %2095 = vdwg.mxu0
    %v2096 = vadd.f32 %v2031, %v2082
    %v2097 = vadd.f32 %v2032, %v2085
    %v2098 = vadd.f32 %v2033, %v2090
    %v2099 = vadd.f32 %v2034, %v2093
    %v2102 = vunpack.c.l.b16 %v170
    %v2103 = vunpack.c.l.b16 %v171
    %v2104 = vpack.c.b16 %v2103, %v2102
    %v2107 = vsel %vm1593, %v1585, 0
    %v2110 = vsel %vm1593, %v1586, 0
    %2112 = vmatprep.subr.bf16.mxu0 0
    %2113 = vmatpush1.bf16.msra.mxu0 %v2104
    %2114 = vmatprep.subr.bf16.mxu0 0
    %2115 = vmatpush1.bf16.msra.mxu0 0
    %2116 = vmatprep.subr.bf16.mxu0 0
    %2117 = vmatpush1.bf16.msra.mxu0 0
    %2118 = vmatprep.subr.bf16.mxu0 0
    %2119 = vmatpush1.bf16.msra.mxu0 0
    %2120 = vmatprep.subr.bf16.mxu0 0
    %2121 = vmatpush1.bf16.msra.mxu0 0
    %2122 = vmatprep.subr.bf16.mxu0 0
    %2123 = vmatpush1.bf16.msra.mxu0 0
    %2124 = vmatprep.subr.bf16.mxu0 0
    %2125 = vmatpush1.bf16.msra.mxu0 0
    %2126 = vmatprep.subr.bf16.mxu0 0
    %2127 = vmatpush1.bf16.msra.mxu0 0
    %2128 = vmatprep.subr.bf16.mxu0 0
    %2129 = vmatpush1.bf16.msra.mxu0 0
    %2130 = vmatprep.subr.bf16.mxu0 0
    %2131 = vmatpush1.bf16.msra.mxu0 0
    %2132 = vmatprep.subr.bf16.mxu0 0
    %2133 = vmatpush1.bf16.msra.mxu0 0
    %2134 = vmatprep.subr.bf16.mxu0 0
    %2135 = vmatpush1.bf16.msra.mxu0 0
    %2136 = vmatprep.subr.bf16.mxu0 0
    %2137 = vmatpush1.bf16.msra.mxu0 0
    %2138 = vmatprep.subr.bf16.mxu0 0
    %2139 = vmatpush1.bf16.msra.mxu0 0
    %2140 = vmatprep.subr.bf16.mxu0 0
    %2141 = vmatpush1.bf16.msra.mxu0 0
    %2142 = vmatprep.subr.bf16.mxu0 0
    %2143 = vmatpush1.bf16.msra.mxu0 0
    %2144 = vmatprep.mubr.bf16.mxu0 0
    %2145 = vmatmul.mubr.bf16.gmra.mrb[0].mxu0 %v2107
    %v2146 = vpop.f32.mrb[0].mxu0
    %v2147 = vadd.f32 0.0, %v2146
    %v2148 = vpop.f32.mrb[0].mxu0
    %v2149 = vpop.f32.mrb[0].mxu0
    %v2150 = vadd.f32 0.0, %v2149
    %v2151 = vpop.f32.mrb[0].mxu0
    %2152 = vmatprep.mubr.bf16.mxu0 0
    %2153 = vmatmul.mubr.bf16.gmra.mrb[0].mxu0 %v2110
    %v2154 = vpop.f32.mrb[0].mxu0
    %v2155 = vadd.f32 0.0, %v2154
    %v2156 = vpop.f32.mrb[0].mxu0
    %v2157 = vpop.f32.mrb[0].mxu0
    %v2158 = vadd.f32 0.0, %v2157
    %v2159 = vpop.f32.mrb[0].mxu0
    %2160 = vdwg.mxu0
    %v2161 = vadd.f32 %v2096, %v2147
    %v2162 = vadd.f32 %v2097, %v2150
    %v2163 = vadd.f32 %v2098, %v2155
    %v2164 = vadd.f32 %v2099, %v2158
    %v2166 = vlaneseq
    %v2167 = vshrl.u32 %v2166, 7
    %v2168 = vsub.s32 0, %v2167
    %v2169 = vrot.slane %v172, %v2168
    %v2171 = vadd.f32 %v2161, %v2169
    %v2172 = vadd.f32 %v2162, %v2169
    %v2173 = vadd.f32 %v2163, %v2169
    %v2174 = vadd.f32 %v2164, %v2169
    %v2175 = vmax.f32 %v2171, 0.0
    %v2176 = vmax.f32 %v2172, 0.0
    %v2177 = vmax.f32 %v2173, 0.0
    %v2178 = vmax.f32 %v2174, 0.0
    %v2179 = vpack.c.bf16 %v2176, %v2175
    %v2180 = vpack.c.bf16 %v2178, %v2177
    %v2186 = vunpack.c.l.b16 %v175
    %v2187 = vunpack.c.l.b16 %v176
    %v2188 = vunpack.c.l.b16 %v177
    %v2189 = vunpack.c.l.b16 %v178
    %v2190 = vunpack.c.l.b16 %v179
    %v2191 = vpack.c.b16 %v2187, %v2186
    %v2192 = vpack.c.b16 %v2189, %v2188
    %v2193 = vpack.c.b16 %v2190, %v2190
    %v2197 = vsel %vm368, %v2193, 0
    %2199 = vmatprep.subr.bf16.mxu0 0
    %2200 = vmatpush1.bf16.msra.mxu0 %v2191
    %2201 = vmatprep.subr.bf16.mxu0 0
    %2202 = vmatpush1.bf16.msra.mxu0 %v2192
    %2203 = vmatprep.subr.bf16.mxu0 0
    %2204 = vmatpush1.bf16.msra.mxu0 %v2197
    %2205 = vmatprep.subr.bf16.mxu0 0
    %2206 = vmatpush1.bf16.msra.mxu0 0
    %2207 = vmatprep.subr.bf16.mxu0 0
    %2208 = vmatpush1.bf16.msra.mxu0 0
    %2209 = vmatprep.subr.bf16.mxu0 0
    %2210 = vmatpush1.bf16.msra.mxu0 0
    %2211 = vmatprep.subr.bf16.mxu0 0
    %2212 = vmatpush1.bf16.msra.mxu0 0
    %2213 = vmatprep.subr.bf16.mxu0 0
    %2214 = vmatpush1.bf16.msra.mxu0 0
    %2215 = vmatprep.subr.bf16.mxu0 0
    %2216 = vmatpush1.bf16.msra.mxu0 0
    %2217 = vmatprep.subr.bf16.mxu0 0
    %2218 = vmatpush1.bf16.msra.mxu0 0
    %2219 = vmatprep.subr.bf16.mxu0 0
    %2220 = vmatpush1.bf16.msra.mxu0 0
    %2221 = vmatprep.subr.bf16.mxu0 0
    %2222 = vmatpush1.bf16.msra.mxu0 0
    %2223 = vmatprep.subr.bf16.mxu0 0
    %2224 = vmatpush1.bf16.msra.mxu0 0
    %2225 = vmatprep.subr.bf16.mxu0 0
    %2226 = vmatpush1.bf16.msra.mxu0 0
    %2227 = vmatprep.subr.bf16.mxu0 0
    %2228 = vmatpush1.bf16.msra.mxu0 0
    %2229 = vmatprep.subr.bf16.mxu0 0
    %2230 = vmatpush1.bf16.msra.mxu0 0
    %2231 = vmatprep.mubr.bf16.mxu0 0
    %2232 = vmatmul.mubr.bf16.gmra.mrb[0].mxu0 %v1300
    %v2233 = vpop.f32.mrb[0].mxu0
    %v2234 = vadd.f32 0.0, %v2233
    %v2235 = vpop.f32.mrb[0].mxu0
    %v2236 = vpop.f32.mrb[0].mxu0
    %v2237 = vadd.f32 0.0, %v2236
    %v2238 = vpop.f32.mrb[0].mxu0
    %2239 = vmatprep.mubr.bf16.mxu0 0
    %2240 = vmatmul.mubr.bf16.gmra.mrb[0].mxu0 %v1303
    %v2241 = vpop.f32.mrb[0].mxu0
    %v2242 = vadd.f32 0.0, %v2241
    %v2243 = vpop.f32.mrb[0].mxu0
    %v2244 = vpop.f32.mrb[0].mxu0
    %v2245 = vadd.f32 0.0, %v2244
    %v2246 = vpop.f32.mrb[0].mxu0
    %2247 = vdwg.mxu0
    %v2250 = vunpack.c.l.b16 %v173
    %v2251 = vunpack.c.l.b16 %v174
    %v2252 = vpack.c.b16 %v2251, %v2250
    %v2255 = vsel %vm1593, %v2179, 0
    %v2258 = vsel %vm1593, %v2180, 0
    %2260 = vmatprep.subr.bf16.mxu0 0
    %2261 = vmatpush1.bf16.msra.mxu0 %v2252
    %2262 = vmatprep.subr.bf16.mxu0 0
    %2263 = vmatpush1.bf16.msra.mxu0 0
    %2264 = vmatprep.subr.bf16.mxu0 0
    %2265 = vmatpush1.bf16.msra.mxu0 0
    %2266 = vmatprep.subr.bf16.mxu0 0
    %2267 = vmatpush1.bf16.msra.mxu0 0
    %2268 = vmatprep.subr.bf16.mxu0 0
    %2269 = vmatpush1.bf16.msra.mxu0 0
    %2270 = vmatprep.subr.bf16.mxu0 0
    %2271 = vmatpush1.bf16.msra.mxu0 0
    %2272 = vmatprep.subr.bf16.mxu0 0
    %2273 = vmatpush1.bf16.msra.mxu0 0
    %2274 = vmatprep.subr.bf16.mxu0 0
    %2275 = vmatpush1.bf16.msra.mxu0 0
    %2276 = vmatprep.subr.bf16.mxu0 0
    %2277 = vmatpush1.bf16.msra.mxu0 0
    %2278 = vmatprep.subr.bf16.mxu0 0
    %2279 = vmatpush1.bf16.msra.mxu0 0
    %2280 = vmatprep.subr.bf16.mxu0 0
    %2281 = vmatpush1.bf16.msra.mxu0 0
    %2282 = vmatprep.subr.bf16.mxu0 0
    %2283 = vmatpush1.bf16.msra.mxu0 0
    %2284 = vmatprep.subr.bf16.mxu0 0
    %2285 = vmatpush1.bf16.msra.mxu0 0
    %2286 = vmatprep.subr.bf16.mxu0 0
    %2287 = vmatpush1.bf16.msra.mxu0 0
    %2288 = vmatprep.subr.bf16.mxu0 0
    %2289 = vmatpush1.bf16.msra.mxu0 0
    %2290 = vmatprep.subr.bf16.mxu0 0
    %2291 = vmatpush1.bf16.msra.mxu0 0
    %2292 = vmatprep.mubr.bf16.mxu0 0
    %2293 = vmatmul.mubr.bf16.gmra.mrb[0].mxu0 %v2255
    %v2294 = vpop.f32.mrb[0].mxu0
    %v2295 = vadd.f32 %v2234, %v2294
    %v2296 = vpop.f32.mrb[0].mxu0
    %v2297 = vpop.f32.mrb[0].mxu0
    %v2298 = vadd.f32 %v2237, %v2297
    %v2299 = vpop.f32.mrb[0].mxu0
    %2300 = vmatprep.mubr.bf16.mxu0 0
    %2301 = vmatmul.mubr.bf16.gmra.mrb[0].mxu0 %v2258
    %v2302 = vpop.f32.mrb[0].mxu0
    %v2303 = vadd.f32 %v2242, %v2302
    %v2304 = vpop.f32.mrb[0].mxu0
    %v2305 = vpop.f32.mrb[0].mxu0
    %v2306 = vadd.f32 %v2245, %v2305
    %v2307 = vpop.f32.mrb[0].mxu0
    %2308 = vdwg.mxu0
    %v2310 = vlaneseq
    %v2311 = vshrl.u32 %v2310, 7
    %v2312 = vsub.s32 0, %v2311
    %v2313 = vrot.slane %v180, %v2312
    %v2315 = vadd.f32 %v2295, %v2313
    %v2316 = vadd.f32 %v2298, %v2313
    %v2317 = vadd.f32 %v2303, %v2313
    %v2318 = vadd.f32 %v2306, %v2313
    %v2319 = vmax.f32 %v2315, 0.0
    %v2320 = vmax.f32 %v2316, 0.0
    %v2321 = vmax.f32 %v2317, 0.0
    %v2322 = vmax.f32 %v2318, 0.0
    %vm2323 = vcmask 523264
    %v2324 = vsel %vm2323, %v2319, 0.0
    %v2325 = vsel %vm2323, %v2320, 0.0
    %v2326 = vadd.f32 %v2324, %v2325
    %v2327 = vrot.slane %v2326, 4
    %v2328 = vadd.f32 %v2326, %v2327
    %v2329 = vrot.slane %v2328, 2
    %v2330 = vadd.f32 %v2328, %v2329
    %v2331 = vrot.slane %v2330, 1
    %v2332 = vadd.f32 %v2330, %v2331
    %v2333 = vsel %vm2323, %v2321, 0.0
    %v2334 = vsel %vm2323, %v2322, 0.0
    %v2335 = vadd.f32 %v2333, %v2334
    %v2336 = vrot.slane %v2335, 4
    %v2337 = vadd.f32 %v2335, %v2336
    %v2338 = vrot.slane %v2337, 2
    %v2339 = vadd.f32 %v2337, %v2338
    %v2340 = vrot.slane %v2339, 1
    %v2341 = vadd.f32 %v2339, %v2340
    %v2342 = vrcp.pop 16.0
    %v2343 = vmul.f32 %v2332, %v2342
    %v2344 = vmul.f32 %v2341, %v2342
    %v2345 = vpack.c.bf16 %v2343, %v2343
    %v2346 = vpack.c.bf16 %v2344, %v2344
    %v2348 = vlaneseq
    %v2349 = vshrl.u32 %v2348, 7
    %v2350 = vsub.s32 0, %v2349
    %v2351 = vrot.slane %v189, %v2350
    %v2355 = vunpack.c.l.b16 %v2345
    %v2356 = vunpack.c.l.b16 %v2346
    %vm2357 = vcmask 1041409
    %v2358 = vsel %vm2357, %v2356, %v2355
    %v2359 = vpack.c.b16 %v2358, %v2358
    %v2368 = vunpack.c.l.b16 %v181
    %v2369 = vunpack.c.l.b16 %v182
    %v2370 = vunpack.c.l.b16 %v183
    %v2371 = vunpack.c.l.b16 %v184
    %v2372 = vunpack.c.l.b16 %v185
    %v2373 = vunpack.c.l.b16 %v186
    %v2374 = vunpack.c.l.b16 %v187
    %v2375 = vunpack.c.l.b16 %v188
    %v2376 = vpack.c.b16 %v2369, %v2368
    %v2377 = vpack.c.b16 %v2371, %v2370
    %v2378 = vpack.c.b16 %v2373, %v2372
    %v2379 = vpack.c.b16 %v2375, %v2374
    %v2385 = vsel %vm2323, %v2359, 0
    %2387 = vmatprep.subr.bf16.mxu0 0
    %2388 = vmatpush1.bf16.msra.mxu0 %v2376
    %2389 = vmatprep.subr.bf16.mxu0 0
    %2390 = vmatpush1.bf16.msra.mxu0 %v2377
    %2391 = vmatprep.subr.bf16.mxu0 0
    %2392 = vmatpush1.bf16.msra.mxu0 %v2378
    %2393 = vmatprep.subr.bf16.mxu0 0
    %2394 = vmatpush1.bf16.msra.mxu0 %v2379
    %2395 = vmatprep.subr.bf16.mxu0 0
    %2396 = vmatpush1.bf16.msra.mxu0 0
    %2397 = vmatprep.subr.bf16.mxu0 0
    %2398 = vmatpush1.bf16.msra.mxu0 0
    %2399 = vmatprep.subr.bf16.mxu0 0
    %2400 = vmatpush1.bf16.msra.mxu0 0
    %2401 = vmatprep.subr.bf16.mxu0 0
    %2402 = vmatpush1.bf16.msra.mxu0 0
    %2403 = vmatprep.subr.bf16.mxu0 0
    %2404 = vmatpush1.bf16.msra.mxu0 0
    %2405 = vmatprep.subr.bf16.mxu0 0
    %2406 = vmatpush1.bf16.msra.mxu0 0
    %2407 = vmatprep.subr.bf16.mxu0 0
    %2408 = vmatpush1.bf16.msra.mxu0 0
    %2409 = vmatprep.subr.bf16.mxu0 0
    %2410 = vmatpush1.bf16.msra.mxu0 0
    %2411 = vmatprep.subr.bf16.mxu0 0
    %2412 = vmatpush1.bf16.msra.mxu0 0
    %2413 = vmatprep.subr.bf16.mxu0 0
    %2414 = vmatpush1.bf16.msra.mxu0 0
    %2415 = vmatprep.subr.bf16.mxu0 0
    %2416 = vmatpush1.bf16.msra.mxu0 0
    %2417 = vmatprep.subr.bf16.mxu0 0
    %2418 = vmatpush1.bf16.msra.mxu0 0
    %2419 = vmatprep.mubr.bf16.mxu0 0
    %2420 = vmatmul.mubr.bf16.gmra.mrb[0].mxu0 %v2385
    %v2421 = vpop.f32.mrb[0].mxu0
    %v2422 = vadd.f32 %v2351, %v2421
    %v2423 = vpop.f32.mrb[0].mxu0
    %v2424 = vpop.f32.mrb[0].mxu0
    %v2425 = vpop.f32.mrb[0].mxu0
    %2426 = vdwg.mxu0
    %v2427 = vtanh.pop %v2422
    %vm2428 = vcmask 58368
    %2429 = vst.msk [vmem:[#allocation2] sm:$0x3] %vm2428, %v2427
    // Predicated region
    $region66: #{branch_first_forward.1} parent=1 // pred_check
      _
    $region67: #{branch_first_forward.1} parent=1 // pred_check_branch
      %2431 = sbr.rel (0) target = $region69
    $region68: #{branch_first_forward.1} parent=1 // pred_region
      %s2433 = ssub.s32 32, 32
      %2434 = vsyncadd [#allocation3], %s2433
      %s2436 = sshll.u32 [#allocation2], 4
      %s2437 = int_to_ptr.vmem [resolvable:$true] %s2436
      %2439 = dma.vmem_to_hbm [thread:$0]  %s2437, 32, %s16, [#allocation3]
    $region69: #{branch_first_forward.1} parent=1 // pred_fallthru
      _
    // Predicated region
    $region70: #{branch_first_forward.1} parent=1 // pred_check
      _
    $region71: #{branch_first_forward.1} parent=1 // pred_check_branch
      %2441 = sbr.rel (0) target = $region73
    $region72: #{branch_first_forward.1} parent=1 // pred_region
      %2442 = dma.done [#allocation3], 32
    $region73: #{branch_first_forward.1} parent=1 // pred_fallthru
      _
    %2443 = vsyncpa [#allocation3], 1

</llo_original>
